<compile_context>
chip_gen: v6e
topology: v6e:2x2x1
jax: 0.10.0
libtpu: 0.0.40
codegen_flags: <defaults>
</compile_context>

<pallas_src>
import functools

import jax
import jax.numpy as jnp
from jax import lax
from jax.experimental import pallas as pl
from jax.experimental.pallas import tpu as pltpu

_LANE = 128


def _round_up(x, m):
    return (x + m - 1) // m * m


# ----------------------------------------------------------------------------
# Fused multi-layer RNN kernel: one invocation per batch block. The whole
# activation slab stays in VMEM across layers; input projection hoisted out of
# the recurrence; only h_{t-1} @ W_hh + tanh inside the time loop.
# ----------------------------------------------------------------------------
def _rnn_stack_kernel(x_ref, *rest, num_layers, mxu_dtype):
    w_refs = rest[:3 * num_layers]          # [wih_0, whh_0, b_0, wih_1, ...]
    out_ref = rest[3 * num_layers]          # (bt, S, H)
    act_ref = rest[3 * num_layers + 1]      # VMEM scratch (bt, S, H)

    bt, seq, _ = x_ref.shape
    h_dim = out_ref.shape[-1]

    for layer in range(num_layers):
        wih_ref = w_refs[3 * layer]
        whh_ref = w_refs[3 * layer + 1]
        b_ref = w_refs[3 * layer + 2]

        src_ref = x_ref if layer == 0 else act_ref
        dst_ref = out_ref if layer == num_layers - 1 else act_ref

        e_in = src_ref.shape[-1]
        # Hoisted input projection for the whole (batch-block, seq) slab:
        # one lane-dense MXU matmul; folded bias (b_ih + b_hh) added once.
        x2d = src_ref[...].reshape(bt * seq, e_in)
        xw = jnp.dot(x2d.astype(mxu_dtype), wih_ref[...].astype(mxu_dtype),
                     preferred_element_type=jnp.float32) + b_ref[...]
        # Stash X@W_ih + b in the destination slab; each time-row is then
        # overwritten in place with h_t.
        dst_ref[...] = xw.reshape(bt, seq, h_dim)

        whh = whh_ref[...].astype(mxu_dtype)

        def step(t, h_prev):
            xw_t = dst_ref[:, pl.ds(t, 1), :].reshape(bt, h_dim)
            h_new = jnp.tanh(
                xw_t + jnp.dot(h_prev.astype(mxu_dtype), whh,
                               preferred_element_type=jnp.float32))
            dst_ref[:, pl.ds(t, 1), :] = h_new.reshape(bt, 1, h_dim)
            return h_new

        h0 = jnp.zeros((bt, h_dim), jnp.float32)
        if seq <= 32:
            # Fully unrolled time loop with static slices (small fixed S).
            h_prev = h0
            for t in range(seq):
                h_prev = step(t, h_prev)
        else:
            lax.fori_loop(0, seq, step, h0)


def rnn_stack(x, layers, *, mxu_dtype):
    """x: (B, S, E) batch-major. layers: list of dicts(wih, whh, b).
    Returns (B, S, H) batch-major, f32, after all RNN layers."""
    B, S, E = x.shape
    H = layers[0]["whh"].shape[0]
    num_layers = len(layers)
    # Split the batch into 2 independent blocks only when it is big enough to
    # keep the per-block matmuls well shaped (v7x: both TensorCores do work).
    if B >= 16 and B % 2 == 0:
        b_tile = B // 2
    else:
        b_tile = B

    in_specs = [pl.BlockSpec((b_tile, S, E), lambda i: (i, 0, 0))]
    args = [x]
    for lw in layers:
        in_specs += [
            pl.BlockSpec(lw["wih"].shape, lambda i: (0, 0)),
            pl.BlockSpec(lw["whh"].shape, lambda i: (0, 0)),
            pl.BlockSpec(lw["b"].shape, lambda i: (0, 0)),
        ]
        args += [lw["wih"], lw["whh"], lw["b"]]

    kernel = functools.partial(_rnn_stack_kernel,
                               num_layers=num_layers, mxu_dtype=mxu_dtype)
    return pl.pallas_call(
        kernel,
        out_shape=jax.ShapeDtypeStruct((B, S, H), jnp.float32),
        grid_spec=pltpu.PrefetchScalarGridSpec(
            num_scalar_prefetch=0,
            grid=(B // b_tile,),
            in_specs=in_specs,
            out_specs=pl.BlockSpec((b_tile, S, H), lambda i: (i, 0, 0)),
            scratch_shapes=[pltpu.VMEM((b_tile, S, H), jnp.float32)],
        ),
        compiler_params=pltpu.CompilerParams(
            dimension_semantics=("parallel",),   # recurrence is inside the body
            vmem_limit_bytes=64 * 1024 * 1024,
        ),
    )(*args)


# ----------------------------------------------------------------------------
# Fused MLP + tied-embedding projection, tiled over (row tiles, vocab tiles).
#   h = relu(h @ W_i + b_i) x n_hidden ; h = h @ W_out + b_out   (once per row tile)
#   logits[i, j] = h[i] @ emb[j]^T                               (per grid point)
# ----------------------------------------------------------------------------
def _mlp_tied_proj_kernel(*refs, n_hidden, mxu_dtype):
    n_wb = 2 * n_hidden + 2
    x_ref = refs[0]
    wb = refs[1:1 + n_wb]                 # [w1,b1, ..., w_out,b_out]
    emb_ref = refs[1 + n_wb]              # already in mxu_dtype
    out_ref = refs[2 + n_wb]
    hfin_ref = refs[3 + n_wb]             # VMEM scratch (row_tile, E), mxu_dtype

    @pl.when(pl.program_id(1) == 0)       # compute the MLP head once per row tile
    def _():
        h = x_ref[...]
        for i in range(n_hidden):
            w = wb[2 * i][...]
            bias = wb[2 * i + 1][...]
            h = jnp.maximum(
                jnp.dot(h.astype(mxu_dtype), w.astype(mxu_dtype),
                        preferred_element_type=jnp.float32) + bias, 0.0)
            # dropout: identity (eval mode)
        w_out = wb[-2][...]
        b_out = wb[-1][...]
        hfin = jnp.dot(h.astype(mxu_dtype), w_out.astype(mxu_dtype),
                       preferred_element_type=jnp.float32) + b_out
        hfin_ref[...] = hfin.astype(hfin_ref.dtype)

    # Tied projection: contract over E directly (no emb.T materialization).
    out_ref[...] = lax.dot_general(
        hfin_ref[...], emb_ref[...],
        dimension_numbers=(((1,), (1,)), ((), ())),
        preferred_element_type=jnp.float32)


def mlp_tied_proj(h2d, hidden_ws, hidden_bs, w_out, b_out, emb_mxu, *, mxu_dtype):
    """h2d: (N, H) f32. emb_mxu: (V, E) in mxu_dtype. Returns logits (N, V) f32."""
    N, H = h2d.shape
    V, E = emb_mxu.shape
    TN = N if N <= 256 else 256                      # caller pads N accordingly
    if V % 512 == 0 and V >= 512:
        TV = 512
    elif V % 256 == 0 and V >= 256:
        TV = 256
    else:
        TV = 128                                     # V is padded to 128-multiple
    n_hidden = len(hidden_ws)
    wb = []
    for w, bias in zip(hidden_ws, hidden_bs):
        wb += [w, bias]
    wb += [w_out, b_out]

    in_specs = [pl.BlockSpec((TN, H), lambda i, j: (i, 0))]
    for a in wb:
        in_specs.append(pl.BlockSpec(a.shape, lambda i, j: (0, 0)))
    in_specs.append(pl.BlockSpec((TV, E), lambda i, j: (j, 0)))

    kernel = functools.partial(_mlp_tied_proj_kernel,
                               n_hidden=n_hidden, mxu_dtype=mxu_dtype)
    return pl.pallas_call(
        kernel,
        out_shape=jax.ShapeDtypeStruct((N, V), jnp.float32),
        grid_spec=pltpu.PrefetchScalarGridSpec(
            num_scalar_prefetch=0,
            grid=(N // TN, V // TV),
            in_specs=in_specs,
            out_specs=pl.BlockSpec((TN, TV), lambda i, j: (i, j)),
            scratch_shapes=[pltpu.VMEM((TN, E), mxu_dtype)],
        ),
        compiler_params=pltpu.CompilerParams(
            # row tiles independent (megacore); vocab axis carries the scratch.
            dimension_semantics=("parallel", "arbitrary"),
            vmem_limit_bytes=64 * 1024 * 1024,
        ),
    )(h2d, *wb, emb_mxu)


# ----------------------------------------------------------------------------
# Parameters (stored pre-padded to lane-dense 128-multiples; padding is exact).
# ----------------------------------------------------------------------------
def init_params(key, *, d_emb, d_hid, num_rnn_layers, num_linear_layers,
                pad_token_id, vocab_size):
    E_p = _round_up(d_emb, _LANE)
    H_p = _round_up(d_hid, _LANE)
    V_p = _round_up(vocab_size, _LANE)
    ks = iter(jax.random.split(key, 4 * num_rnn_layers + 2 * num_linear_layers + 8))

    def unif(k, shape, bound):
        return jax.random.uniform(k, shape, jnp.float32, -bound, bound)

    def pad2(a, r, c):
        return jnp.pad(a, ((0, r - a.shape[0]), (0, c - a.shape[1])))

    emb = jax.random.normal(next(ks), (vocab_size, d_emb), jnp.float32)
    emb = emb.at[pad_token_id].set(0.0)              # padding_idx row is zeros
    params = {"emb": pad2(emb, V_p, E_p)}

    bound = 1.0 / float(d_hid) ** 0.5
    rnn = []
    for layer in range(num_rnn_layers):
        e_in = d_emb if layer == 0 else d_hid
        e_in_p = E_p if layer == 0 else H_p
        wih = unif(next(ks), (e_in, d_hid), bound)   # stored (in, out)
        whh = unif(next(ks), (d_hid, d_hid), bound)
        bih = unif(next(ks), (1, d_hid), bound)
        bhh = unif(next(ks), (1, d_hid), bound)
        rnn.append(dict(
            wih=pad2(wih, e_in_p, H_p),
            whh=pad2(whh, H_p, H_p),
            b=pad2(bih + bhh, 1, H_p),               # folded bias (added once)
        ))
    params["rnn"] = rnn

    hidden_ws, hidden_bs = [], []
    for _ in range(num_linear_layers):
        hidden_ws.append(pad2(unif(next(ks), (d_hid, d_hid), bound), H_p, H_p))
        hidden_bs.append(pad2(unif(next(ks), (1, d_hid), bound), 1, H_p))
    params["hidden_ws"] = hidden_ws
    params["hidden_bs"] = hidden_bs
    params["w_out"] = pad2(unif(next(ks), (d_hid, d_emb), bound), H_p, E_p)
    params["b_out"] = pad2(unif(next(ks), (1, d_emb), bound), 1, E_p)
    return params


# ----------------------------------------------------------------------------
# Forward
# ----------------------------------------------------------------------------
@functools.partial(jax.jit, static_argnames=("vocab_size", "mxu_dtype"))
def forward(params, batch_sequences, *, vocab_size, mxu_dtype=jnp.bfloat16):
    """batch_sequences: (B, S) int32 token ids. Returns logits (B, S, V) f32."""
    B, S = batch_sequences.shape
    emb = params["emb"]                                  # (V_p, E_p), lane-dense
    x = jnp.take(emb, batch_sequences, axis=0)           # (B, S, E_p) gather glue

    # All RNN layers fused: activation slab never leaves VMEM between layers.
    h = rnn_stack(x, params["rnn"], mxu_dtype=mxu_dtype)  # (B, S, H_p)
    # inter-layer / post-RNN dropout: identity in eval mode

    H = h.shape[-1]
    N = B * S
    h2d = h.reshape(N, H)
    N_p = _round_up(N, 8) if N <= 256 else _round_up(N, 256)
    if N_p != N:
        h2d = jnp.pad(h2d, ((0, N_p - N), (0, 0)))

    # Pre-cast the tied embedding once: halves HBM traffic of the dominant
    # streamed operand on the bf16 path (no-op on the f32 path).
    emb_mxu = emb.astype(mxu_dtype)
    logits_p = mlp_tied_proj(h2d, params["hidden_ws"], params["hidden_bs"],
                             params["w_out"], params["b_out"], emb_mxu,
                             mxu_dtype=mxu_dtype)        # (N_p, V_p)
    return logits_p[:N, :vocab_size].reshape(B, S, vocab_size)


def forward_ref(params, batch_sequences, vocab_size):
    """Pure-JAX f32 reference (highest matmul precision)."""
    hp = lax.Precision.HIGHEST
    emb = params["emb"]
    x = jnp.take(emb, batch_sequences, axis=0)
    B, S, _ = x.shape
    h_in = x
    for layer in params["rnn"]:
        H = layer["whh"].shape[0]
        h_prev = jnp.zeros((B, H), jnp.float32)
        outs = []
        for t in range(S):
            h_prev = jnp.tanh(jnp.dot(h_in[:, t], layer["wih"], precision=hp)
                              + jnp.dot(h_prev, layer["whh"], precision=hp)
                              + layer["b"])
            outs.append(h_prev)
        h_in = jnp.stack(outs, axis=1)
    h = h_in
    for w, b in zip(params["hidden_ws"], params["hidden_bs"]):
        h = jnp.maximum(jnp.dot(h, w, precision=hp) + b, 0.0)
    h = jnp.dot(h, params["w_out"], precision=hp) + params["b_out"]
    logits = jnp.einsum("bse,ve->bsv", h, emb, precision=hp)
    return logits[:, :, :vocab_size]


if __name__ == "__main__":
    d_emb, d_hid = 32, 48
    num_rnn_layers, num_linear_layers = 2, 2
    pad_token_id, vocab_size = 0, 40
    B, S = 2, 8

    key = jax.random.PRNGKey(0)
    k_param, k_tok = jax.random.split(key)
    params = init_params(
        k_param, d_emb=d_emb, d_hid=d_hid, num_rnn_layers=num_rnn_layers,
        num_linear_layers=num_linear_layers, pad_token_id=pad_token_id,
        vocab_size=vocab_size)

    batch_sequences = jax.random.randint(k_tok, (B, S), 0, vocab_size, jnp.int32)

    ref = forward_ref(params, batch_sequences, vocab_size)

    # f32-MXU path: tight-ish structural check against the f32 reference.
    logits_f32 = jax.block_until_ready(
        forward(params, batch_sequences, vocab_size=vocab_size,
                mxu_dtype=jnp.float32))
    assert logits_f32.shape == (B, S, vocab_size)
    assert logits_f32.dtype == jnp.float32
    assert jnp.allclose(logits_f32, ref, atol=5e-2, rtol=5e-2), "f32 path mismatch"

    # bf16-MXU fast path (default): looser tolerance vs the f32 reference.
    logits_bf16 = jax.block_until_ready(
        forward(params, batch_sequences, vocab_size=vocab_size,
                mxu_dtype=jnp.bfloat16))
    assert logits_bf16.shape == (B, S, vocab_size)
    assert logits_bf16.dtype == jnp.float32
    assert jnp.allclose(logits_bf16, ref, atol=0.25, rtol=0.1), "bf16 path mismatch"

    print("KERNEL_OK")
</pallas_src>

<mosaic_0001>
module attributes {stable_mosaic.version = 11 : i64} {
  func.func @_mlp_tied_proj_kernel(%arg0: i32, %arg1: i32, %arg2: memref<16x128xf32, #tpu.memory_space<vmem>>, %arg3: memref<128x128xf32, #tpu.memory_space<vmem>>, %arg4: memref<1x128xf32, #tpu.memory_space<vmem>>, %arg5: memref<128x128xf32, #tpu.memory_space<vmem>>, %arg6: memref<1x128xf32, #tpu.memory_space<vmem>>, %arg7: memref<128x128xf32, #tpu.memory_space<vmem>>, %arg8: memref<1x128xf32, #tpu.memory_space<vmem>>, %arg9: memref<128x128xf32, #tpu.memory_space<vmem>>, %arg10: memref<16x128xf32, #tpu.memory_space<vmem>>, %arg11: memref<16x128xf32, #tpu.memory_space<vmem>>) attributes {dimension_semantics = [#tpu.dimension_semantics<parallel>, #tpu.dimension_semantics<arbitrary>], iteration_bounds = array<i64: 1, 1>, scalar_prefetch = 0 : i64, scratch_operands = 1 : i64, tpu.core_type = #tpu.core_type<tc>, window_params = [{transform_indices = @transform_0, window_bounds = array<i64: 16, 128>}, {pipeline_mode = #tpu.pipeline_mode<synchronous>, transform_indices = @transform_1, window_bounds = array<i64: 128, 128>}, {pipeline_mode = #tpu.pipeline_mode<synchronous>, transform_indices = @transform_2, window_bounds = array<i64: 1, 128>}, {pipeline_mode = #tpu.pipeline_mode<synchronous>, transform_indices = @transform_3, window_bounds = array<i64: 128, 128>}, {pipeline_mode = #tpu.pipeline_mode<synchronous>, transform_indices = @transform_4, window_bounds = array<i64: 1, 128>}, {pipeline_mode = #tpu.pipeline_mode<synchronous>, transform_indices = @transform_5, window_bounds = array<i64: 128, 128>}, {pipeline_mode = #tpu.pipeline_mode<synchronous>, transform_indices = @transform_6, window_bounds = array<i64: 1, 128>}, {transform_indices = @transform_7, window_bounds = array<i64: 128, 128>}, {transform_indices = @transform_8, window_bounds = array<i64: 16, 128>}]} {
    %c0_i32 = arith.constant 0 : i32
    %0 = arith.cmpi eq, %arg1, %c0_i32 : i32
    %1 = arith.extui %0 : i1 to i32
    %c0_i32_0 = arith.constant 0 : i32
    %2 = arith.cmpi ne, %1, %c0_i32_0 : i32
    scf.if %2 {
      %c0_6 = arith.constant 0 : index
      %c0_7 = arith.constant 0 : index
      %7 = vector.load %arg2[%c0_6, %c0_7] : memref<16x128xf32, #tpu.memory_space<vmem>>, vector<16x128xf32>
      %c0_8 = arith.constant 0 : index
      %c0_9 = arith.constant 0 : index
      %8 = vector.load %arg3[%c0_8, %c0_9] : memref<128x128xf32, #tpu.memory_space<vmem>>, vector<128x128xf32>
      %c0_10 = arith.constant 0 : index
      %c0_11 = arith.constant 0 : index
      %9 = vector.load %arg4[%c0_10, %c0_11] : memref<1x128xf32, #tpu.memory_space<vmem>>, vector<1x128xf32>
      %cst_12 = arith.constant dense<0.000000e+00> : vector<16x128xf32>
      %10 = tpu.matmul %7, %8, %cst_12 {dimension_numbers = #tpu.dot_dimension_numbers<[1], [0], [0], [1], [0, 0, 1, 1], [], []>} : vector<16x128xf32>, vector<128x128xf32>, vector<16x128xf32> -> vector<16x128xf32>
      %11 = vector.broadcast %9 : vector<1x128xf32> to vector<16x128xf32>
      %12 = arith.addf %10, %11 : vector<16x128xf32>
      %cst_13 = arith.constant 0.000000e+00 : f32
      %13 = vector.broadcast %cst_13 : f32 to vector<16x128xf32>
      %14 = arith.maximumf %12, %13 : vector<16x128xf32>
      %c0_14 = arith.constant 0 : index
      %c0_15 = arith.constant 0 : index
      %15 = vector.load %arg5[%c0_14, %c0_15] : memref<128x128xf32, #tpu.memory_space<vmem>>, vector<128x128xf32>
      %c0_16 = arith.constant 0 : index
      %c0_17 = arith.constant 0 : index
      %16 = vector.load %arg6[%c0_16, %c0_17] : memref<1x128xf32, #tpu.memory_space<vmem>>, vector<1x128xf32>
      %cst_18 = arith.constant dense<0.000000e+00> : vector<16x128xf32>
      %17 = tpu.matmul %14, %15, %cst_18 {dimension_numbers = #tpu.dot_dimension_numbers<[1], [0], [0], [1], [0, 0, 1, 1], [], []>} : vector<16x128xf32>, vector<128x128xf32>, vector<16x128xf32> -> vector<16x128xf32>
      %18 = vector.broadcast %16 : vector<1x128xf32> to vector<16x128xf32>
      %19 = arith.addf %17, %18 : vector<16x128xf32>
      %cst_19 = arith.constant 0.000000e+00 : f32
      %20 = vector.broadcast %cst_19 : f32 to vector<16x128xf32>
      %21 = arith.maximumf %19, %20 : vector<16x128xf32>
      %c0_20 = arith.constant 0 : index
      %c0_21 = arith.constant 0 : index
      %22 = vector.load %arg7[%c0_20, %c0_21] : memref<128x128xf32, #tpu.memory_space<vmem>>, vector<128x128xf32>
      %c0_22 = arith.constant 0 : index
      %c0_23 = arith.constant 0 : index
      %23 = vector.load %arg8[%c0_22, %c0_23] : memref<1x128xf32, #tpu.memory_space<vmem>>, vector<1x128xf32>
      %cst_24 = arith.constant dense<0.000000e+00> : vector<16x128xf32>
      %24 = tpu.matmul %21, %22, %cst_24 {dimension_numbers = #tpu.dot_dimension_numbers<[1], [0], [0], [1], [0, 0, 1, 1], [], []>} : vector<16x128xf32>, vector<128x128xf32>, vector<16x128xf32> -> vector<16x128xf32>
      %25 = vector.broadcast %23 : vector<1x128xf32> to vector<16x128xf32>
      %26 = arith.addf %24, %25 : vector<16x128xf32>
      %c0_25 = arith.constant 0 : index
      %c0_26 = arith.constant 0 : index
      %27 = vector.load %arg11[%c0_25, %c0_26] : memref<16x128xf32, #tpu.memory_space<vmem>>, vector<16x128xf32>
      tpu.vector_store %arg11[%c0_25, %c0_26], %26 {strides = array<i32>} : memref<16x128xf32, #tpu.memory_space<vmem>>, vector<16x128xf32>,
    } else {
    }
    %c0 = arith.constant 0 : index
    %c0_1 = arith.constant 0 : index
    %3 = vector.load %arg11[%c0, %c0_1] : memref<16x128xf32, #tpu.memory_space<vmem>>, vector<16x128xf32>
    %c0_2 = arith.constant 0 : index
    %c0_3 = arith.constant 0 : index
    %4 = vector.load %arg9[%c0_2, %c0_3] : memref<128x128xf32, #tpu.memory_space<vmem>>, vector<128x128xf32>
    %cst = arith.constant dense<0.000000e+00> : vector<16x128xf32>
    %5 = tpu.matmul %3, %4, %cst {dimension_numbers = #tpu.dot_dimension_numbers<[1], [1], [0], [0], [0, 0, 1, 0], [], []>} : vector<16x128xf32>, vector<128x128xf32>, vector<16x128xf32> -> vector<16x128xf32>
    %c0_4 = arith.constant 0 : index
    %c0_5 = arith.constant 0 : index
    %6 = vector.load %arg10[%c0_4, %c0_5] : memref<16x128xf32, #tpu.memory_space<vmem>>, vector<16x128xf32>
    tpu.vector_store %arg10[%c0_4, %c0_5], %5 {strides = array<i32>} : memref<16x128xf32, #tpu.memory_space<vmem>>, vector<16x128xf32>,
    return
  }
  func.func @transform_0(%arg0: i32, %arg1: i32) -> (i32, i32) {
    %c0_i32 = arith.constant 0 : i32
    %c0_i32_0 = arith.constant 0 : i32
    return %arg0, %c0_i32 : i32, i32
  }
  func.func @transform_1(%arg0: i32, %arg1: i32) -> (i32, i32) {
    %c0_i32 = arith.constant 0 : i32
    %c0_i32_0 = arith.constant 0 : i32
    %c0_i32_1 = arith.constant 0 : i32
    return %c0_i32, %c0_i32_0 : i32, i32
  }
  func.func @transform_2(%arg0: i32, %arg1: i32) -> (i32, i32) {
    %c0_i32 = arith.constant 0 : i32
    %c0_i32_0 = arith.constant 0 : i32
    %c0_i32_1 = arith.constant 0 : i32
    return %c0_i32, %c0_i32_0 : i32, i32
  }
  func.func @transform_3(%arg0: i32, %arg1: i32) -> (i32, i32) {
    %c0_i32 = arith.constant 0 : i32
    %c0_i32_0 = arith.constant 0 : i32
    %c0_i32_1 = arith.constant 0 : i32
    return %c0_i32, %c0_i32_0 : i32, i32
  }
  func.func @transform_4(%arg0: i32, %arg1: i32) -> (i32, i32) {
    %c0_i32 = arith.constant 0 : i32
    %c0_i32_0 = arith.constant 0 : i32
    %c0_i32_1 = arith.constant 0 : i32
    return %c0_i32, %c0_i32_0 : i32, i32
  }
  func.func @transform_5(%arg0: i32, %arg1: i32) -> (i32, i32) {
    %c0_i32 = arith.constant 0 : i32
    %c0_i32_0 = arith.constant 0 : i32
    %c0_i32_1 = arith.constant 0 : i32
    return %c0_i32, %c0_i32_0 : i32, i32
  }
  func.func @transform_6(%arg0: i32, %arg1: i32) -> (i32, i32) {
    %c0_i32 = arith.constant 0 : i32
    %c0_i32_0 = arith.constant 0 : i32
    %c0_i32_1 = arith.constant 0 : i32
    return %c0_i32, %c0_i32_0 : i32, i32
  }
  func.func @transform_7(%arg0: i32, %arg1: i32) -> (i32, i32) {
    %c0_i32 = arith.constant 0 : i32
    %c0_i32_0 = arith.constant 0 : i32
    return %arg1, %c0_i32 : i32, i32
  }
  func.func @transform_8(%arg0: i32, %arg1: i32) -> (i32, i32) {
    %c0_i32 = arith.constant 0 : i32
    return %arg0, %arg1 : i32, i32
  }
}

module attributes {stable_mosaic.version = 11 : i64} {
  func.func @_rnn_stack_kernel(%arg0: i32, %arg1: memref<2x8x128xf32, #tpu.memory_space<vmem>>, %arg2: memref<128x128xf32, #tpu.memory_space<vmem>>, %arg3: memref<128x128xf32, #tpu.memory_space<vmem>>, %arg4: memref<1x128xf32, #tpu.memory_space<vmem>>, %arg5: memref<128x128xf32, #tpu.memory_space<vmem>>, %arg6: memref<128x128xf32, #tpu.memory_space<vmem>>, %arg7: memref<1x128xf32, #tpu.memory_space<vmem>>, %arg8: memref<2x8x128xf32, #tpu.memory_space<vmem>>, %arg9: memref<2x8x128xf32, #tpu.memory_space<vmem>>) attributes {dimension_semantics = [#tpu.dimension_semantics<parallel>], iteration_bounds = array<i64: 1>, scalar_prefetch = 0 : i64, scratch_operands = 1 : i64, tpu.core_type = #tpu.core_type<tc>, window_params = [{transform_indices = @transform_0, window_bounds = array<i64: 2, 8, 128>}, {pipeline_mode = #tpu.pipeline_mode<synchronous>, transform_indices = @transform_1, window_bounds = array<i64: 128, 128>}, {pipeline_mode = #tpu.pipeline_mode<synchronous>, transform_indices = @transform_2, window_bounds = array<i64: 128, 128>}, {pipeline_mode = #tpu.pipeline_mode<synchronous>, transform_indices = @transform_3, window_bounds = array<i64: 1, 128>}, {pipeline_mode = #tpu.pipeline_mode<synchronous>, transform_indices = @transform_4, window_bounds = array<i64: 128, 128>}, {pipeline_mode = #tpu.pipeline_mode<synchronous>, transform_indices = @transform_5, window_bounds = array<i64: 128, 128>}, {pipeline_mode = #tpu.pipeline_mode<synchronous>, transform_indices = @transform_6, window_bounds = array<i64: 1, 128>}, {transform_indices = @transform_7, window_bounds = array<i64: 2, 8, 128>}]} {
    %c0 = arith.constant 0 : index
    %c0_0 = arith.constant 0 : index
    %c0_1 = arith.constant 0 : index
    %0 = vector.load %arg1[%c0, %c0_0, %c0_1] : memref<2x8x128xf32, #tpu.memory_space<vmem>>, vector<2x8x128xf32>
    %1 = vector.shape_cast %0 : vector<2x8x128xf32> to vector<16x128xf32>
    %c0_2 = arith.constant 0 : index
    %c0_3 = arith.constant 0 : index
    %2 = vector.load %arg2[%c0_2, %c0_3] : memref<128x128xf32, #tpu.memory_space<vmem>>, vector<128x128xf32>
    %cst = arith.constant dense<0.000000e+00> : vector<16x128xf32>
    %3 = tpu.matmul %1, %2, %cst {dimension_numbers = #tpu.dot_dimension_numbers<[1], [0], [0], [1], [0, 0, 1, 1], [], []>} : vector<16x128xf32>, vector<128x128xf32>, vector<16x128xf32> -> vector<16x128xf32>
    %c0_4 = arith.constant 0 : index
    %c0_5 = arith.constant 0 : index
    %4 = vector.load %arg4[%c0_4, %c0_5] : memref<1x128xf32, #tpu.memory_space<vmem>>, vector<1x128xf32>
    %5 = vector.broadcast %4 : vector<1x128xf32> to vector<16x128xf32>
    %6 = arith.addf %3, %5 : vector<16x128xf32>
    %7 = vector.shape_cast %6 : vector<16x128xf32> to vector<2x8x128xf32>
    %c0_6 = arith.constant 0 : index
    %c0_7 = arith.constant 0 : index
    %c0_8 = arith.constant 0 : index
    %8 = vector.load %arg9[%c0_6, %c0_7, %c0_8] : memref<2x8x128xf32, #tpu.memory_space<vmem>>, vector<2x8x128xf32>
    tpu.vector_store %arg9[%c0_6, %c0_7, %c0_8], %7 {strides = array<i32>} : memref<2x8x128xf32, #tpu.memory_space<vmem>>, vector<2x8x128xf32>,
    %c0_9 = arith.constant 0 : index
    %c0_10 = arith.constant 0 : index
    %9 = vector.load %arg3[%c0_9, %c0_10] : memref<128x128xf32, #tpu.memory_space<vmem>>, vector<128x128xf32>
    %cst_11 = arith.constant 0.000000e+00 : f32
    %10 = vector.broadcast %cst_11 : f32 to vector<2x128xf32>
    %c0_12 = arith.constant 0 : index
    %c0_13 = arith.constant 0 : index
    %c0_14 = arith.constant 0 : index
    %11 = vector.load %arg9[%c0_12, %c0_13, %c0_14] : memref<2x8x128xf32, #tpu.memory_space<vmem>>, vector<2x1x128xf32>
    %12 = vector.shape_cast %11 : vector<2x1x128xf32> to vector<2x128xf32>
    %cst_15 = arith.constant dense<0.000000e+00> : vector<2x128xf32>
    %13 = tpu.matmul %10, %9, %cst_15 {dimension_numbers = #tpu.dot_dimension_numbers<[1], [0], [0], [1], [0, 0, 1, 1], [], []>} : vector<2x128xf32>, vector<128x128xf32>, vector<2x128xf32> -> vector<2x128xf32>
    %14 = arith.addf %12, %13 : vector<2x128xf32>
    %15 = math.tanh %14 : vector<2x128xf32>
    %16 = vector.shape_cast %15 : vector<2x128xf32> to vector<2x1x128xf32>
    %c0_16 = arith.constant 0 : index
    %c0_17 = arith.constant 0 : index
    %c0_18 = arith.constant 0 : index
    %17 = vector.load %arg9[%c0_16, %c0_17, %c0_18] : memref<2x8x128xf32, #tpu.memory_space<vmem>>, vector<2x1x128xf32>
    tpu.vector_store %arg9[%c0_16, %c0_17, %c0_18], %16 {strides = array<i32>} : memref<2x8x128xf32, #tpu.memory_space<vmem>>, vector<2x1x128xf32>,
    %c0_19 = arith.constant 0 : index
    %c1 = arith.constant 1 : index
    %c0_20 = arith.constant 0 : index
    %18 = vector.load %arg9[%c0_19, %c1, %c0_20] : memref<2x8x128xf32, #tpu.memory_space<vmem>>, vector<2x1x128xf32>
    %19 = vector.shape_cast %18 : vector<2x1x128xf32> to vector<2x128xf32>
    %cst_21 = arith.constant dense<0.000000e+00> : vector<2x128xf32>
    %20 = tpu.matmul %15, %9, %cst_21 {dimension_numbers = #tpu.dot_dimension_numbers<[1], [0], [0], [1], [0, 0, 1, 1], [], []>} : vector<2x128xf32>, vector<128x128xf32>, vector<2x128xf32> -> vector<2x128xf32>
    %21 = arith.addf %19, %20 : vector<2x128xf32>
    %22 = math.tanh %21 : vector<2x128xf32>
    %23 = vector.shape_cast %22 : vector<2x128xf32> to vector<2x1x128xf32>
    %c0_22 = arith.constant 0 : index
    %c1_23 = arith.constant 1 : index
    %c0_24 = arith.constant 0 : index
    %24 = vector.load %arg9[%c0_22, %c1_23, %c0_24] : memref<2x8x128xf32, #tpu.memory_space<vmem>>, vector<2x1x128xf32>
    tpu.vector_store %arg9[%c0_22, %c1_23, %c0_24], %23 {strides = array<i32>} : memref<2x8x128xf32, #tpu.memory_space<vmem>>, vector<2x1x128xf32>,
    %c0_25 = arith.constant 0 : index
    %c2 = arith.constant 2 : index
    %c0_26 = arith.constant 0 : index
    %25 = vector.load %arg9[%c0_25, %c2, %c0_26] : memref<2x8x128xf32, #tpu.memory_space<vmem>>, vector<2x1x128xf32>
    %26 = vector.shape_cast %25 : vector<2x1x128xf32> to vector<2x128xf32>
    %cst_27 = arith.constant dense<0.000000e+00> : vector<2x128xf32>
    %27 = tpu.matmul %22, %9, %cst_27 {dimension_numbers = #tpu.dot_dimension_numbers<[1], [0], [0], [1], [0, 0, 1, 1], [], []>} : vector<2x128xf32>, vector<128x128xf32>, vector<2x128xf32> -> vector<2x128xf32>
    %28 = arith.addf %26, %27 : vector<2x128xf32>
    %29 = math.tanh %28 : vector<2x128xf32>
    %30 = vector.shape_cast %29 : vector<2x128xf32> to vector<2x1x128xf32>
    %c0_28 = arith.constant 0 : index
    %c2_29 = arith.constant 2 : index
    %c0_30 = arith.constant 0 : index
    %31 = vector.load %arg9[%c0_28, %c2_29, %c0_30] : memref<2x8x128xf32, #tpu.memory_space<vmem>>, vector<2x1x128xf32>
    tpu.vector_store %arg9[%c0_28, %c2_29, %c0_30], %30 {strides = array<i32>} : memref<2x8x128xf32, #tpu.memory_space<vmem>>, vector<2x1x128xf32>,
    %c0_31 = arith.constant 0 : index
    %c3 = arith.constant 3 : index
    %c0_32 = arith.constant 0 : index
    %32 = vector.load %arg9[%c0_31, %c3, %c0_32] : memref<2x8x128xf32, #tpu.memory_space<vmem>>, vector<2x1x128xf32>
    %33 = vector.shape_cast %32 : vector<2x1x128xf32> to vector<2x128xf32>
    %cst_33 = arith.constant dense<0.000000e+00> : vector<2x128xf32>
    %34 = tpu.matmul %29, %9, %cst_33 {dimension_numbers = #tpu.dot_dimension_numbers<[1], [0], [0], [1], [0, 0, 1, 1], [], []>} : vector<2x128xf32>, vector<128x128xf32>, vector<2x128xf32> -> vector<2x128xf32>
    %35 = arith.addf %33, %34 : vector<2x128xf32>
    %36 = math.tanh %35 : vector<2x128xf32>
    %37 = vector.shape_cast %36 : vector<2x128xf32> to vector<2x1x128xf32>
    %c0_34 = arith.constant 0 : index
    %c3_35 = arith.constant 3 : index
    %c0_36 = arith.constant 0 : index
    %38 = vector.load %arg9[%c0_34, %c3_35, %c0_36] : memref<2x8x128xf32, #tpu.memory_space<vmem>>, vector<2x1x128xf32>
    tpu.vector_store %arg9[%c0_34, %c3_35, %c0_36], %37 {strides = array<i32>} : memref<2x8x128xf32, #tpu.memory_space<vmem>>, vector<2x1x128xf32>,
    %c0_37 = arith.constant 0 : index
    %c4 = arith.constant 4 : index
    %c0_38 = arith.constant 0 : index
    %39 = vector.load %arg9[%c0_37, %c4, %c0_38] : memref<2x8x128xf32, #tpu.memory_space<vmem>>, vector<2x1x128xf32>
    %40 = vector.shape_cast %39 : vector<2x1x128xf32> to vector<2x128xf32>
    %cst_39 = arith.constant dense<0.000000e+00> : vector<2x128xf32>
    %41 = tpu.matmul %36, %9, %cst_39 {dimension_numbers = #tpu.dot_dimension_numbers<[1], [0], [0], [1], [0, 0, 1, 1], [], []>} : vector<2x128xf32>, vector<128x128xf32>, vector<2x128xf32> -> vector<2x128xf32>
    %42 = arith.addf %40, %41 : vector<2x128xf32>
    %43 = math.tanh %42 : vector<2x128xf32>
    %44 = vector.shape_cast %43 : vector<2x128xf32> to vector<2x1x128xf32>
    %c0_40 = arith.constant 0 : index
    %c4_41 = arith.constant 4 : index
    %c0_42 = arith.constant 0 : index
    %45 = vector.load %arg9[%c0_40, %c4_41, %c0_42] : memref<2x8x128xf32, #tpu.memory_space<vmem>>, vector<2x1x128xf32>
    tpu.vector_store %arg9[%c0_40, %c4_41, %c0_42], %44 {strides = array<i32>} : memref<2x8x128xf32, #tpu.memory_space<vmem>>, vector<2x1x128xf32>,
    %c0_43 = arith.constant 0 : index
    %c5 = arith.constant 5 : index
    %c0_44 = arith.constant 0 : index
    %46 = vector.load %arg9[%c0_43, %c5, %c0_44] : memref<2x8x128xf32, #tpu.memory_space<vmem>>, vector<2x1x128xf32>
    %47 = vector.shape_cast %46 : vector<2x1x128xf32> to vector<2x128xf32>
    %cst_45 = arith.constant dense<0.000000e+00> : vector<2x128xf32>
    %48 = tpu.matmul %43, %9, %cst_45 {dimension_numbers = #tpu.dot_dimension_numbers<[1], [0], [0], [1], [0, 0, 1, 1], [], []>} : vector<2x128xf32>, vector<128x128xf32>, vector<2x128xf32> -> vector<2x128xf32>
    %49 = arith.addf %47, %48 : vector<2x128xf32>
    %50 = math.tanh %49 : vector<2x128xf32>
    %51 = vector.shape_cast %50 : vector<2x128xf32> to vector<2x1x128xf32>
    %c0_46 = arith.constant 0 : index
    %c5_47 = arith.constant 5 : index
    %c0_48 = arith.constant 0 : index
    %52 = vector.load %arg9[%c0_46, %c5_47, %c0_48] : memref<2x8x128xf32, #tpu.memory_space<vmem>>, vector<2x1x128xf32>
    tpu.vector_store %arg9[%c0_46, %c5_47, %c0_48], %51 {strides = array<i32>} : memref<2x8x128xf32, #tpu.memory_space<vmem>>, vector<2x1x128xf32>,
    %c0_49 = arith.constant 0 : index
    %c6 = arith.constant 6 : index
    %c0_50 = arith.constant 0 : index
    %53 = vector.load %arg9[%c0_49, %c6, %c0_50] : memref<2x8x128xf32, #tpu.memory_space<vmem>>, vector<2x1x128xf32>
    %54 = vector.shape_cast %53 : vector<2x1x128xf32> to vector<2x128xf32>
    %cst_51 = arith.constant dense<0.000000e+00> : vector<2x128xf32>
    %55 = tpu.matmul %50, %9, %cst_51 {dimension_numbers = #tpu.dot_dimension_numbers<[1], [0], [0], [1], [0, 0, 1, 1], [], []>} : vector<2x128xf32>, vector<128x128xf32>, vector<2x128xf32> -> vector<2x128xf32>
    %56 = arith.addf %54, %55 : vector<2x128xf32>
    %57 = math.tanh %56 : vector<2x128xf32>
    %58 = vector.shape_cast %57 : vector<2x128xf32> to vector<2x1x128xf32>
    %c0_52 = arith.constant 0 : index
    %c6_53 = arith.constant 6 : index
    %c0_54 = arith.constant 0 : index
    %59 = vector.load %arg9[%c0_52, %c6_53, %c0_54] : memref<2x8x128xf32, #tpu.memory_space<vmem>>, vector<2x1x128xf32>
    tpu.vector_store %arg9[%c0_52, %c6_53, %c0_54], %58 {strides = array<i32>} : memref<2x8x128xf32, #tpu.memory_space<vmem>>, vector<2x1x128xf32>,
    %c0_55 = arith.constant 0 : index
    %c7 = arith.constant 7 : index
    %c0_56 = arith.constant 0 : index
    %60 = vector.load %arg9[%c0_55, %c7, %c0_56] : memref<2x8x128xf32, #tpu.memory_space<vmem>>, vector<2x1x128xf32>
    %61 = vector.shape_cast %60 : vector<2x1x128xf32> to vector<2x128xf32>
    %cst_57 = arith.constant dense<0.000000e+00> : vector<2x128xf32>
    %62 = tpu.matmul %57, %9, %cst_57 {dimension_numbers = #tpu.dot_dimension_numbers<[1], [0], [0], [1], [0, 0, 1, 1], [], []>} : vector<2x128xf32>, vector<128x128xf32>, vector<2x128xf32> -> vector<2x128xf32>
    %63 = arith.addf %61, %62 : vector<2x128xf32>
    %64 = math.tanh %63 : vector<2x128xf32>
    %65 = vector.shape_cast %64 : vector<2x128xf32> to vector<2x1x128xf32>
    %c0_58 = arith.constant 0 : index
    %c7_59 = arith.constant 7 : index
    %c0_60 = arith.constant 0 : index
    %66 = vector.load %arg9[%c0_58, %c7_59, %c0_60] : memref<2x8x128xf32, #tpu.memory_space<vmem>>, vector<2x1x128xf32>
    tpu.vector_store %arg9[%c0_58, %c7_59, %c0_60], %65 {strides = array<i32>} : memref<2x8x128xf32, #tpu.memory_space<vmem>>, vector<2x1x128xf32>,
    %c0_61 = arith.constant 0 : index
    %c0_62 = arith.constant 0 : index
    %c0_63 = arith.constant 0 : index
    %67 = vector.load %arg9[%c0_61, %c0_62, %c0_63] : memref<2x8x128xf32, #tpu.memory_space<vmem>>, vector<2x8x128xf32>
    %68 = vector.shape_cast %67 : vector<2x8x128xf32> to vector<16x128xf32>
    %c0_64 = arith.constant 0 : index
    %c0_65 = arith.constant 0 : index
    %69 = vector.load %arg5[%c0_64, %c0_65] : memref<128x128xf32, #tpu.memory_space<vmem>>, vector<128x128xf32>
    %cst_66 = arith.constant dense<0.000000e+00> : vector<16x128xf32>
    %70 = tpu.matmul %68, %69, %cst_66 {dimension_numbers = #tpu.dot_dimension_numbers<[1], [0], [0], [1], [0, 0, 1, 1], [], []>} : vector<16x128xf32>, vector<128x128xf32>, vector<16x128xf32> -> vector<16x128xf32>
    %c0_67 = arith.constant 0 : index
    %c0_68 = arith.constant 0 : index
    %71 = vector.load %arg7[%c0_67, %c0_68] : memref<1x128xf32, #tpu.memory_space<vmem>>, vector<1x128xf32>
    %72 = vector.broadcast %71 : vector<1x128xf32> to vector<16x128xf32>
    %73 = arith.addf %70, %72 : vector<16x128xf32>
    %74 = vector.shape_cast %73 : vector<16x128xf32> to vector<2x8x128xf32>
    %c0_69 = arith.constant 0 : index
    %c0_70 = arith.constant 0 : index
    %c0_71 = arith.constant 0 : index
    %75 = vector.load %arg8[%c0_69, %c0_70, %c0_71] : memref<2x8x128xf32, #tpu.memory_space<vmem>>, vector<2x8x128xf32>
    tpu.vector_store %arg8[%c0_69, %c0_70, %c0_71], %74 {strides = array<i32>} : memref<2x8x128xf32, #tpu.memory_space<vmem>>, vector<2x8x128xf32>,
    %c0_72 = arith.constant 0 : index
    %c0_73 = arith.constant 0 : index
    %76 = vector.load %arg6[%c0_72, %c0_73] : memref<128x128xf32, #tpu.memory_space<vmem>>, vector<128x128xf32>
    %cst_74 = arith.constant 0.000000e+00 : f32
    %77 = vector.broadcast %cst_74 : f32 to vector<2x128xf32>
    %c0_75 = arith.constant 0 : index
    %c0_76 = arith.constant 0 : index
    %c0_77 = arith.constant 0 : index
    %78 = vector.load %arg8[%c0_75, %c0_76, %c0_77] : memref<2x8x128xf32, #tpu.memory_space<vmem>>, vector<2x1x128xf32>
    %79 = vector.shape_cast %78 : vector<2x1x128xf32> to vector<2x128xf32>
    %cst_78 = arith.constant dense<0.000000e+00> : vector<2x128xf32>
    %80 = tpu.matmul %77, %76, %cst_78 {dimension_numbers = #tpu.dot_dimension_numbers<[1], [0], [0], [1], [0, 0, 1, 1], [], []>} : vector<2x128xf32>, vector<128x128xf32>, vector<2x128xf32> -> vector<2x128xf32>
    %81 = arith.addf %79, %80 : vector<2x128xf32>
    %82 = math.tanh %81 : vector<2x128xf32>
    %83 = vector.shape_cast %82 : vector<2x128xf32> to vector<2x1x128xf32>
    %c0_79 = arith.constant 0 : index
    %c0_80 = arith.constant 0 : index
    %c0_81 = arith.constant 0 : index
    %84 = vector.load %arg8[%c0_79, %c0_80, %c0_81] : memref<2x8x128xf32, #tpu.memory_space<vmem>>, vector<2x1x128xf32>
    tpu.vector_store %arg8[%c0_79, %c0_80, %c0_81], %83 {strides = array<i32>} : memref<2x8x128xf32, #tpu.memory_space<vmem>>, vector<2x1x128xf32>,
    %c0_82 = arith.constant 0 : index
    %c1_83 = arith.constant 1 : index
    %c0_84 = arith.constant 0 : index
    %85 = vector.load %arg8[%c0_82, %c1_83, %c0_84] : memref<2x8x128xf32, #tpu.memory_space<vmem>>, vector<2x1x128xf32>
    %86 = vector.shape_cast %85 : vector<2x1x128xf32> to vector<2x128xf32>
    %cst_85 = arith.constant dense<0.000000e+00> : vector<2x128xf32>
    %87 = tpu.matmul %82, %76, %cst_85 {dimension_numbers = #tpu.dot_dimension_numbers<[1], [0], [0], [1], [0, 0, 1, 1], [], []>} : vector<2x128xf32>, vector<128x128xf32>, vector<2x128xf32> -> vector<2x128xf32>
    %88 = arith.addf %86, %87 : vector<2x128xf32>
    %89 = math.tanh %88 : vector<2x128xf32>
    %90 = vector.shape_cast %89 : vector<2x128xf32> to vector<2x1x128xf32>
    %c0_86 = arith.constant 0 : index
    %c1_87 = arith.constant 1 : index
    %c0_88 = arith.constant 0 : index
    %91 = vector.load %arg8[%c0_86, %c1_87, %c0_88] : memref<2x8x128xf32, #tpu.memory_space<vmem>>, vector<2x1x128xf32>
    tpu.vector_store %arg8[%c0_86, %c1_87, %c0_88], %90 {strides = array<i32>} : memref<2x8x128xf32, #tpu.memory_space<vmem>>, vector<2x1x128xf32>,
    %c0_89 = arith.constant 0 : index
    %c2_90 = arith.constant 2 : index
    %c0_91 = arith.constant 0 : index
    %92 = vector.load %arg8[%c0_89, %c2_90, %c0_91] : memref<2x8x128xf32, #tpu.memory_space<vmem>>, vector<2x1x128xf32>
    %93 = vector.shape_cast %92 : vector<2x1x128xf32> to vector<2x128xf32>
    %cst_92 = arith.constant dense<0.000000e+00> : vector<2x128xf32>
    %94 = tpu.matmul %89, %76, %cst_92 {dimension_numbers = #tpu.dot_dimension_numbers<[1], [0], [0], [1], [0, 0, 1, 1], [], []>} : vector<2x128xf32>, vector<128x128xf32>, vector<2x128xf32> -> vector<2x128xf32>
    %95 = arith.addf %93, %94 : vector<2x128xf32>
    %96 = math.tanh %95 : vector<2x128xf32>
    %97 = vector.shape_cast %96 : vector<2x128xf32> to vector<2x1x128xf32>
    %c0_93 = arith.constant 0 : index
    %c2_94 = arith.constant 2 : index
    %c0_95 = arith.constant 0 : index
    %98 = vector.load %arg8[%c0_93, %c2_94, %c0_95] : memref<2x8x128xf32, #tpu.memory_space<vmem>>, vector<2x1x128xf32>
    tpu.vector_store %arg8[%c0_93, %c2_94, %c0_95], %97 {strides = array<i32>} : memref<2x8x128xf32, #tpu.memory_space<vmem>>, vector<2x1x128xf32>,
    %c0_96 = arith.constant 0 : index
    %c3_97 = arith.constant 3 : index
    %c0_98 = arith.constant 0 : index
    %99 = vector.load %arg8[%c0_96, %c3_97, %c0_98] : memref<2x8x128xf32, #tpu.memory_space<vmem>>, vector<2x1x128xf32>
    %100 = vector.shape_cast %99 : vector<2x1x128xf32> to vector<2x128xf32>
    %cst_99 = arith.constant dense<0.000000e+00> : vector<2x128xf32>
    %101 = tpu.matmul %96, %76, %cst_99 {dimension_numbers = #tpu.dot_dimension_numbers<[1], [0], [0], [1], [0, 0, 1, 1], [], []>} : vector<2x128xf32>, vector<128x128xf32>, vector<2x128xf32> -> vector<2x128xf32>
    %102 = arith.addf %100, %101 : vector<2x128xf32>
    %103 = math.tanh %102 : vector<2x128xf32>
    %104 = vector.shape_cast %103 : vector<2x128xf32> to vector<2x1x128xf32>
    %c0_100 = arith.constant 0 : index
    %c3_101 = arith.constant 3 : index
    %c0_102 = arith.constant 0 : index
    %105 = vector.load %arg8[%c0_100, %c3_101, %c0_102] : memref<2x8x128xf32, #tpu.memory_space<vmem>>, vector<2x1x128xf32>
    tpu.vector_store %arg8[%c0_100, %c3_101, %c0_102], %104 {strides = array<i32>} : memref<2x8x128xf32, #tpu.memory_space<vmem>>, vector<2x1x128xf32>,
    %c0_103 = arith.constant 0 : index
    %c4_104 = arith.constant 4 : index
    %c0_105 = arith.constant 0 : index
    %106 = vector.load %arg8[%c0_103, %c4_104, %c0_105] : memref<2x8x128xf32, #tpu.memory_space<vmem>>, vector<2x1x128xf32>
    %107 = vector.shape_cast %106 : vector<2x1x128xf32> to vector<2x128xf32>
    %cst_106 = arith.constant dense<0.000000e+00> : vector<2x128xf32>
    %108 = tpu.matmul %103, %76, %cst_106 {dimension_numbers = #tpu.dot_dimension_numbers<[1], [0], [0], [1], [0, 0, 1, 1], [], []>} : vector<2x128xf32>, vector<128x128xf32>, vector<2x128xf32> -> vector<2x128xf32>
    %109 = arith.addf %107, %108 : vector<2x128xf32>
    %110 = math.tanh %109 : vector<2x128xf32>
    %111 = vector.shape_cast %110 : vector<2x128xf32> to vector<2x1x128xf32>
    %c0_107 = arith.constant 0 : index
    %c4_108 = arith.constant 4 : index
    %c0_109 = arith.constant 0 : index
    %112 = vector.load %arg8[%c0_107, %c4_108, %c0_109] : memref<2x8x128xf32, #tpu.memory_space<vmem>>, vector<2x1x128xf32>
    tpu.vector_store %arg8[%c0_107, %c4_108, %c0_109], %111 {strides = array<i32>} : memref<2x8x128xf32, #tpu.memory_space<vmem>>, vector<2x1x128xf32>,
    %c0_110 = arith.constant 0 : index
    %c5_111 = arith.constant 5 : index
    %c0_112 = arith.constant 0 : index
    %113 = vector.load %arg8[%c0_110, %c5_111, %c0_112] : memref<2x8x128xf32, #tpu.memory_space<vmem>>, vector<2x1x128xf32>
    %114 = vector.shape_cast %113 : vector<2x1x128xf32> to vector<2x128xf32>
    %cst_113 = arith.constant dense<0.000000e+00> : vector<2x128xf32>
    %115 = tpu.matmul %110, %76, %cst_113 {dimension_numbers = #tpu.dot_dimension_numbers<[1], [0], [0], [1], [0, 0, 1, 1], [], []>} : vector<2x128xf32>, vector<128x128xf32>, vector<2x128xf32> -> vector<2x128xf32>
    %116 = arith.addf %114, %115 : vector<2x128xf32>
    %117 = math.tanh %116 : vector<2x128xf32>
    %118 = vector.shape_cast %117 : vector<2x128xf32> to vector<2x1x128xf32>
    %c0_114 = arith.constant 0 : index
    %c5_115 = arith.constant 5 : index
    %c0_116 = arith.constant 0 : index
    %119 = vector.load %arg8[%c0_114, %c5_115, %c0_116] : memref<2x8x128xf32, #tpu.memory_space<vmem>>, vector<2x1x128xf32>
    tpu.vector_store %arg8[%c0_114, %c5_115, %c0_116], %118 {strides = array<i32>} : memref<2x8x128xf32, #tpu.memory_space<vmem>>, vector<2x1x128xf32>,
    %c0_117 = arith.constant 0 : index
    %c6_118 = arith.constant 6 : index
    %c0_119 = arith.constant 0 : index
    %120 = vector.load %arg8[%c0_117, %c6_118, %c0_119] : memref<2x8x128xf32, #tpu.memory_space<vmem>>, vector<2x1x128xf32>
    %121 = vector.shape_cast %120 : vector<2x1x128xf32> to vector<2x128xf32>
    %cst_120 = arith.constant dense<0.000000e+00> : vector<2x128xf32>
    %122 = tpu.matmul %117, %76, %cst_120 {dimension_numbers = #tpu.dot_dimension_numbers<[1], [0], [0], [1], [0, 0, 1, 1], [], []>} : vector<2x128xf32>, vector<128x128xf32>, vector<2x128xf32> -> vector<2x128xf32>
    %123 = arith.addf %121, %122 : vector<2x128xf32>
    %124 = math.tanh %123 : vector<2x128xf32>
    %125 = vector.shape_cast %124 : vector<2x128xf32> to vector<2x1x128xf32>
    %c0_121 = arith.constant 0 : index
    %c6_122 = arith.constant 6 : index
    %c0_123 = arith.constant 0 : index
    %126 = vector.load %arg8[%c0_121, %c6_122, %c0_123] : memref<2x8x128xf32, #tpu.memory_space<vmem>>, vector<2x1x128xf32>
    tpu.vector_store %arg8[%c0_121, %c6_122, %c0_123], %125 {strides = array<i32>} : memref<2x8x128xf32, #tpu.memory_space<vmem>>, vector<2x1x128xf32>,
    %c0_124 = arith.constant 0 : index
    %c7_125 = arith.constant 7 : index
    %c0_126 = arith.constant 0 : index
    %127 = vector.load %arg8[%c0_124, %c7_125, %c0_126] : memref<2x8x128xf32, #tpu.memory_space<vmem>>, vector<2x1x128xf32>
    %128 = vector.shape_cast %127 : vector<2x1x128xf32> to vector<2x128xf32>
    %cst_127 = arith.constant dense<0.000000e+00> : vector<2x128xf32>
    %129 = tpu.matmul %124, %76, %cst_127 {dimension_numbers = #tpu.dot_dimension_numbers<[1], [0], [0], [1], [0, 0, 1, 1], [], []>} : vector<2x128xf32>, vector<128x128xf32>, vector<2x128xf32> -> vector<2x128xf32>
    %130 = arith.addf %128, %129 : vector<2x128xf32>
    %131 = math.tanh %130 : vector<2x128xf32>
    %132 = vector.shape_cast %131 : vector<2x128xf32> to vector<2x1x128xf32>
    %c0_128 = arith.constant 0 : index
    %c7_129 = arith.constant 7 : index
    %c0_130 = arith.constant 0 : index
    %133 = vector.load %arg8[%c0_128, %c7_129, %c0_130] : memref<2x8x128xf32, #tpu.memory_space<vmem>>, vector<2x1x128xf32>
    tpu.vector_store %arg8[%c0_128, %c7_129, %c0_130], %132 {strides = array<i32>} : memref<2x8x128xf32, #tpu.memory_space<vmem>>, vector<2x1x128xf32>,
    return
  }
  func.func @transform_0(%arg0: i32) -> (i32, i32, i32) {
    %c0_i32 = arith.constant 0 : i32
    %c0_i32_0 = arith.constant 0 : i32
    %c0_i32_1 = arith.constant 0 : i32
    return %arg0, %c0_i32, %c0_i32_0 : i32, i32, i32
  }
  func.func @transform_1(%arg0: i32) -> (i32, i32) {
    %c0_i32 = arith.constant 0 : i32
    %c0_i32_0 = arith.constant 0 : i32
    %c0_i32_1 = arith.constant 0 : i32
    return %c0_i32, %c0_i32_0 : i32, i32
  }
  func.func @transform_2(%arg0: i32) -> (i32, i32) {
    %c0_i32 = arith.constant 0 : i32
    %c0_i32_0 = arith.constant 0 : i32
    %c0_i32_1 = arith.constant 0 : i32
    return %c0_i32, %c0_i32_0 : i32, i32
  }
  func.func @transform_3(%arg0: i32) -> (i32, i32) {
    %c0_i32 = arith.constant 0 : i32
    %c0_i32_0 = arith.constant 0 : i32
    %c0_i32_1 = arith.constant 0 : i32
    return %c0_i32, %c0_i32_0 : i32, i32
  }
  func.func @transform_4(%arg0: i32) -> (i32, i32) {
    %c0_i32 = arith.constant 0 : i32
    %c0_i32_0 = arith.constant 0 : i32
    %c0_i32_1 = arith.constant 0 : i32
    return %c0_i32, %c0_i32_0 : i32, i32
  }
  func.func @transform_5(%arg0: i32) -> (i32, i32) {
    %c0_i32 = arith.constant 0 : i32
    %c0_i32_0 = arith.constant 0 : i32
    %c0_i32_1 = arith.constant 0 : i32
    return %c0_i32, %c0_i32_0 : i32, i32
  }
  func.func @transform_6(%arg0: i32) -> (i32, i32) {
    %c0_i32 = arith.constant 0 : i32
    %c0_i32_0 = arith.constant 0 : i32
    %c0_i32_1 = arith.constant 0 : i32
    return %c0_i32, %c0_i32_0 : i32, i32
  }
  func.func @transform_7(%arg0: i32) -> (i32, i32, i32) {
    %c0_i32 = arith.constant 0 : i32
    %c0_i32_0 = arith.constant 0 : i32
    %c0_i32_1 = arith.constant 0 : i32
    return %arg0, %c0_i32, %c0_i32_0 : i32, i32, i32
  }
}

</mosaic_0001>

<llo_original>
// kernel: forward.3
$region0: #{forward.3}
  #allocation0 [shape = 'u32[]', space=smem, size = 0x4, offset = 0x4, fixed_abs, tag = 'smem constant byte address 0x4 - core index']
  #allocation1 [shape = 'u32[144,128]{1,0:T(1,128)}', space=vmem, size = 0x12000, scoped, tag = 'internal scratch']
  #allocation2 [shape = 'f32[16,128]{1,0:T(8,128)}', space=vmem, size = 0x2000, scoped, tag = 'scratch operand']
  %s0 = inlined_call_operand.vmem [shape: f32[16,128], index: 0, kind: input, shape index: {}]
  %s1 = inlined_call_operand.vmem [shape: f32[128,128], index: 1, kind: input, shape index: {}]
  %s2 = inlined_call_operand.vmem [shape: f32[1,128], index: 2, kind: input, shape index: {}]
  %s3 = inlined_call_operand.vmem [shape: f32[128,128], index: 3, kind: input, shape index: {}]
  %s4 = inlined_call_operand.vmem [shape: f32[1,128], index: 4, kind: input, shape index: {}]
  %s5 = inlined_call_operand.vmem [shape: f32[128,128], index: 5, kind: input, shape index: {}]
  %s6 = inlined_call_operand.vmem [shape: f32[1,128], index: 6, kind: input, shape index: {}]
  %s7 = inlined_call_operand.vmem [shape: f32[128,128], index: 7, kind: input, shape index: {}]
  %s8 = inlined_call_operand.vmem [shape: f32[16,128], index: 8, kind: output, shape index: {}]
  %s9 = sld [smem:[#allocation0]]
  $region46: #{forward.3} parent=0
    _
  %s11 = ssub.s32 1, %s9
  %s12 = scalar_select 0, %s11, %s9
  // Predicated region
  $region2: #{forward.3} parent=0 // pred_check
    _
  $region3: #{forward.3} parent=0 // pred_check_branch
    %14 = sbr.rel (0) target = $region5
  $region4: #{forward.3} parent=0 // pred_region
    _
  $region5: #{forward.3} parent=0 // pred_fallthru
    _
  // Predicated region
  $region6: #{forward.3} parent=0 // pred_check
    _
  $region7: #{forward.3} parent=0 // pred_check_branch
    %16 = sbr.rel (0) target = $region9
  $region8: #{forward.3} parent=0 // pred_region
    _
  $region9: #{forward.3} parent=0 // pred_fallthru
    _
  // Predicated region
  $region10: #{forward.3} parent=0 // pred_check
    _
  $region11: #{forward.3} parent=0 // pred_check_branch
    %18 = sbr.rel (0) target = $region13
  $region12: #{forward.3} parent=0 // pred_region
    _
  $region13: #{forward.3} parent=0 // pred_fallthru
    _
  // Predicated region
  $region14: #{forward.3} parent=0 // pred_check
    _
  $region15: #{forward.3} parent=0 // pred_check_branch
    %20 = sbr.rel (0) target = $region17
  $region16: #{forward.3} parent=0 // pred_region
    _
  $region17: #{forward.3} parent=0 // pred_fallthru
    _
  // Predicated region
  $region18: #{forward.3} parent=0 // pred_check
    _
  $region19: #{forward.3} parent=0 // pred_check_branch
    %22 = sbr.rel (0) target = $region21
  $region20: #{forward.3} parent=0 // pred_region
    _
  $region21: #{forward.3} parent=0 // pred_fallthru
    _
  // Predicated region
  $region22: #{forward.3} parent=0 // pred_check
    _
  $region23: #{forward.3} parent=0 // pred_check_branch
    %24 = sbr.rel (0) target = $region25
  $region24: #{forward.3} parent=0 // pred_region
    _
  $region25: #{forward.3} parent=0 // pred_fallthru
    _
  // Predicated region
  $region26: #{forward.3} parent=0 // pred_check
    _
  $region27: #{forward.3} parent=0 // pred_check_branch
    %26 = sbr.rel (0) target = $region29
  $region28: #{forward.3} parent=0 // pred_region
    _
  $region29: #{forward.3} parent=0 // pred_fallthru
    _
  // Predicated region
  $region30: #{forward.3} parent=0 // pred_check
    _
  $region31: #{forward.3} parent=0 // pred_check_branch
    %28 = sbr.rel (0) target = $region33
  $region32: #{forward.3} parent=0 // pred_region
    _
  $region33: #{forward.3} parent=0 // pred_fallthru
    _
  %p29 = scmp.eq.s32.totalorder 0, 0
  // Predicated region
  $region34: #{forward.3} parent=0 // pred_check
    %p30 = pneg %p29
  $region35: #{forward.3} parent=0 // pred_check_branch
    %32 = sbr.rel (%p30) target = $region37
  $region36: #{forward.3} parent=0 // pred_region
    %v33 = vld [vmem:[%s0] sm:$0xff]
    %v34 = vld [vmem:[%s0 + $0x8] sm:$0xff]
    %v35 = vld [vmem:[%s1] sm:$0xff]
    %v36 = vld [vmem:[%s1 + $0x8] sm:$0xff]
    %v37 = vld [vmem:[%s1 + $0x10] sm:$0xff]
    %v38 = vld [vmem:[%s1 + $0x18] sm:$0xff]
    %v39 = vld [vmem:[%s1 + $0x20] sm:$0xff]
    %v40 = vld [vmem:[%s1 + $0x28] sm:$0xff]
    %v41 = vld [vmem:[%s1 + $0x30] sm:$0xff]
    %v42 = vld [vmem:[%s1 + $0x38] sm:$0xff]
    %v43 = vld [vmem:[%s1 + $0x40] sm:$0xff]
    %v44 = vld [vmem:[%s1 + $0x48] sm:$0xff]
    %v45 = vld [vmem:[%s1 + $0x50] sm:$0xff]
    %v46 = vld [vmem:[%s1 + $0x58] sm:$0xff]
    %v47 = vld [vmem:[%s1 + $0x60] sm:$0xff]
    %v48 = vld [vmem:[%s1 + $0x68] sm:$0xff]
    %v49 = vld [vmem:[%s1 + $0x70] sm:$0xff]
    %v50 = vld [vmem:[%s1 + $0x78] sm:$0xff]
    %v51 = vld [vmem:[%s2] sm:$0x1]
    %v53 = vlaneseq
    %v54 = vshrl.u32 %v53, 7
    %v55 = vsub.s32 0, %v54
    %v56 = vrot.slane %v51, %v55
    %58 = vmatprep.subr.mxu0 0.0
    %59 = vmatpush1.msra.mxu0 %v50
    %60 = vmatprep.subr.mxu0 0.0
    %61 = vmatpush1.msra.mxu0 %v49
    %62 = vmatprep.subr.mxu0 0.0
    %63 = vmatpush1.msra.mxu0 %v48
    %64 = vmatprep.subr.mxu0 0.0
    %65 = vmatpush1.msra.mxu0 %v47
    %66 = vmatprep.subr.mxu0 0.0
    %67 = vmatpush1.msra.mxu0 %v46
    %68 = vmatprep.subr.mxu0 0.0
    %69 = vmatpush1.msra.mxu0 %v45
    %70 = vmatprep.subr.mxu0 0.0
    %71 = vmatpush1.msra.mxu0 %v44
    %72 = vmatprep.subr.mxu0 0.0
    %73 = vmatpush1.msra.mxu0 %v43
    %74 = vmatprep.subr.mxu0 0.0
    %75 = vmatpush1.msra.mxu0 %v42
    %76 = vmatprep.subr.mxu0 0.0
    %77 = vmatpush1.msra.mxu0 %v41
    %78 = vmatprep.subr.mxu0 0.0
    %79 = vmatpush1.msra.mxu0 %v40
    %80 = vmatprep.subr.mxu0 0.0
    %81 = vmatpush1.msra.mxu0 %v39
    %82 = vmatprep.subr.mxu0 0.0
    %83 = vmatpush1.msra.mxu0 %v38
    %84 = vmatprep.subr.mxu0 0.0
    %85 = vmatpush1.msra.mxu0 %v37
    %86 = vmatprep.subr.mxu0 0.0
    %87 = vmatpush1.msra.mxu0 %v36
    %88 = vmatprep.subr.mxu0 0.0
    %89 = vmatpush1.msra.mxu0 %v35
    %90 = vmatprep.subr.mxu0 0.0
    %91 = vmatpush2.msra.mxu0 0.0
    %92 = vmatprep.subr.mxu0 0.0
    %93 = vmatpush2.msra.mxu0 0.0
    %94 = vmatprep.subr.mxu0 0.0
    %95 = vmatpush2.msra.mxu0 0.0
    %96 = vmatprep.subr.mxu0 0.0
    %97 = vmatpush2.msra.mxu0 0.0
    %98 = vmatprep.subr.mxu0 0.0
    %99 = vmatpush2.msra.mxu0 0.0
    %100 = vmatprep.subr.mxu0 0.0
    %101 = vmatpush2.msra.mxu0 0.0
    %102 = vmatprep.subr.mxu0 0.0
    %103 = vmatpush2.msra.mxu0 0.0
    %104 = vmatprep.subr.mxu0 0.0
    %105 = vmatpush2.msra.mxu0 0.0
    %106 = vmatprep.subr.mxu0 0.0
    %107 = vmatpush2.msra.mxu0 0.0
    %108 = vmatprep.subr.mxu0 0.0
    %109 = vmatpush2.msra.mxu0 0.0
    %110 = vmatprep.subr.mxu0 0.0
    %111 = vmatpush2.msra.mxu0 0.0
    %112 = vmatprep.subr.mxu0 0.0
    %113 = vmatpush2.msra.mxu0 0.0
    %114 = vmatprep.subr.mxu0 0.0
    %115 = vmatpush2.msra.mxu0 0.0
    %116 = vmatprep.subr.mxu0 0.0
    %117 = vmatpush2.msra.mxu0 0.0
    %118 = vmatprep.subr.mxu0 0.0
    %119 = vmatpush2.msra.mxu0 0.0
    %120 = vmatprep.subr.mxu0 0.0
    %121 = vmatpush2.msra.mxu0 0.0
    %122 = vmatprep.mubr.f32.mxu0 0.0
    %123 = vmatmul.mubr.f32.gmra.mxu0 %v33
    %v124 = vpop.f32.mrf.mxu0
    %v125 = vadd.f32 %v56, %v124
    %v126 = vpop.f32.mrf.mxu0
    %127 = vmatprep.mubr.f32.mxu0 0.0
    %128 = vmatmul.mubr.f32.gmra.mxu0 %v34
    %v129 = vpop.f32.mrf.mxu0
    %v130 = vadd.f32 %v56, %v129
    %v131 = vpop.f32.mrf.mxu0
    %132 = vdwg.mxu0
    %v133 = vmax.f32 %v125, 0.0
    %v134 = vmax.f32 %v130, 0.0
    %v135 = vld [vmem:[%s3] sm:$0xff]
    %v136 = vld [vmem:[%s3 + $0x8] sm:$0xff]
    %v137 = vld [vmem:[%s3 + $0x10] sm:$0xff]
    %v138 = vld [vmem:[%s3 + $0x18] sm:$0xff]
    %v139 = vld [vmem:[%s3 + $0x20] sm:$0xff]
    %v140 = vld [vmem:[%s3 + $0x28] sm:$0xff]
    %v141 = vld [vmem:[%s3 + $0x30] sm:$0xff]
    %v142 = vld [vmem:[%s3 + $0x38] sm:$0xff]
    %v143 = vld [vmem:[%s3 + $0x40] sm:$0xff]
    %v144 = vld [vmem:[%s3 + $0x48] sm:$0xff]
    %v145 = vld [vmem:[%s3 + $0x50] sm:$0xff]
    %v146 = vld [vmem:[%s3 + $0x58] sm:$0xff]
    %v147 = vld [vmem:[%s3 + $0x60] sm:$0xff]
    %v148 = vld [vmem:[%s3 + $0x68] sm:$0xff]
    %v149 = vld [vmem:[%s3 + $0x70] sm:$0xff]
    %v150 = vld [vmem:[%s3 + $0x78] sm:$0xff]
    %v151 = vld [vmem:[%s4] sm:$0x1]
    %v153 = vlaneseq
    %v154 = vshrl.u32 %v153, 7
    %v155 = vsub.s32 0, %v154
    %v156 = vrot.slane %v151, %v155
    %158 = vmatprep.subr.mxu0 0.0
    %159 = vmatpush1.msra.mxu0 %v150
    %160 = vmatprep.subr.mxu0 0.0
    %161 = vmatpush1.msra.mxu0 %v149
    %162 = vmatprep.subr.mxu0 0.0
    %163 = vmatpush1.msra.mxu0 %v148
    %164 = vmatprep.subr.mxu0 0.0
    %165 = vmatpush1.msra.mxu0 %v147
    %166 = vmatprep.subr.mxu0 0.0
    %167 = vmatpush1.msra.mxu0 %v146
    %168 = vmatprep.subr.mxu0 0.0
    %169 = vmatpush1.msra.mxu0 %v145
    %170 = vmatprep.subr.mxu0 0.0
    %171 = vmatpush1.msra.mxu0 %v144
    %172 = vmatprep.subr.mxu0 0.0
    %173 = vmatpush1.msra.mxu0 %v143
    %174 = vmatprep.subr.mxu0 0.0
    %175 = vmatpush1.msra.mxu0 %v142
    %176 = vmatprep.subr.mxu0 0.0
    %177 = vmatpush1.msra.mxu0 %v141
    %178 = vmatprep.subr.mxu0 0.0
    %179 = vmatpush1.msra.mxu0 %v140
    %180 = vmatprep.subr.mxu0 0.0
    %181 = vmatpush1.msra.mxu0 %v139
    %182 = vmatprep.subr.mxu0 0.0
    %183 = vmatpush1.msra.mxu0 %v138
    %184 = vmatprep.subr.mxu0 0.0
    %185 = vmatpush1.msra.mxu0 %v137
    %186 = vmatprep.subr.mxu0 0.0
    %187 = vmatpush1.msra.mxu0 %v136
    %188 = vmatprep.subr.mxu0 0.0
    %189 = vmatpush1.msra.mxu0 %v135
    %190 = vmatprep.subr.mxu0 0.0
    %191 = vmatpush2.msra.mxu0 0.0
    %192 = vmatprep.subr.mxu0 0.0
    %193 = vmatpush2.msra.mxu0 0.0
    %194 = vmatprep.subr.mxu0 0.0
    %195 = vmatpush2.msra.mxu0 0.0
    %196 = vmatprep.subr.mxu0 0.0
    %197 = vmatpush2.msra.mxu0 0.0
    %198 = vmatprep.subr.mxu0 0.0
    %199 = vmatpush2.msra.mxu0 0.0
    %200 = vmatprep.subr.mxu0 0.0
    %201 = vmatpush2.msra.mxu0 0.0
    %202 = vmatprep.subr.mxu0 0.0
    %203 = vmatpush2.msra.mxu0 0.0
    %204 = vmatprep.subr.mxu0 0.0
    %205 = vmatpush2.msra.mxu0 0.0
    %206 = vmatprep.subr.mxu0 0.0
    %207 = vmatpush2.msra.mxu0 0.0
    %208 = vmatprep.subr.mxu0 0.0
    %209 = vmatpush2.msra.mxu0 0.0
    %210 = vmatprep.subr.mxu0 0.0
    %211 = vmatpush2.msra.mxu0 0.0
    %212 = vmatprep.subr.mxu0 0.0
    %213 = vmatpush2.msra.mxu0 0.0
    %214 = vmatprep.subr.mxu0 0.0
    %215 = vmatpush2.msra.mxu0 0.0
    %216 = vmatprep.subr.mxu0 0.0
    %217 = vmatpush2.msra.mxu0 0.0
    %218 = vmatprep.subr.mxu0 0.0
    %219 = vmatpush2.msra.mxu0 0.0
    %220 = vmatprep.subr.mxu0 0.0
    %221 = vmatpush2.msra.mxu0 0.0
    %222 = vmatprep.mubr.f32.mxu0 0.0
    %223 = vmatmul.mubr.f32.gmra.mxu0 %v133
    %v224 = vpop.f32.mrf.mxu0
    %v225 = vadd.f32 %v156, %v224
    %v226 = vpop.f32.mrf.mxu0
    %227 = vmatprep.mubr.f32.mxu0 0.0
    %228 = vmatmul.mubr.f32.gmra.mxu0 %v134
    %v229 = vpop.f32.mrf.mxu0
    %v230 = vadd.f32 %v156, %v229
    %v231 = vpop.f32.mrf.mxu0
    %232 = vdwg.mxu0
    %v233 = vmax.f32 %v225, 0.0
    %v234 = vmax.f32 %v230, 0.0
    %v235 = vld [vmem:[%s5] sm:$0xff]
    %v236 = vld [vmem:[%s5 + $0x8] sm:$0xff]
    %v237 = vld [vmem:[%s5 + $0x10] sm:$0xff]
    %v238 = vld [vmem:[%s5 + $0x18] sm:$0xff]
    %v239 = vld [vmem:[%s5 + $0x20] sm:$0xff]
    %v240 = vld [vmem:[%s5 + $0x28] sm:$0xff]
    %v241 = vld [vmem:[%s5 + $0x30] sm:$0xff]
    %v242 = vld [vmem:[%s5 + $0x38] sm:$0xff]
    %v243 = vld [vmem:[%s5 + $0x40] sm:$0xff]
    %v244 = vld [vmem:[%s5 + $0x48] sm:$0xff]
    %v245 = vld [vmem:[%s5 + $0x50] sm:$0xff]
    %v246 = vld [vmem:[%s5 + $0x58] sm:$0xff]
    %v247 = vld [vmem:[%s5 + $0x60] sm:$0xff]
    %v248 = vld [vmem:[%s5 + $0x68] sm:$0xff]
    %v249 = vld [vmem:[%s5 + $0x70] sm:$0xff]
    %v250 = vld [vmem:[%s5 + $0x78] sm:$0xff]
    %v251 = vld [vmem:[%s6] sm:$0x1]
    %v253 = vlaneseq
    %v254 = vshrl.u32 %v253, 7
    %v255 = vsub.s32 0, %v254
    %v256 = vrot.slane %v251, %v255
    %258 = vmatprep.subr.mxu0 0.0
    %259 = vmatpush1.msra.mxu0 %v250
    %260 = vmatprep.subr.mxu0 0.0
    %261 = vmatpush1.msra.mxu0 %v249
    %262 = vmatprep.subr.mxu0 0.0
    %263 = vmatpush1.msra.mxu0 %v248
    %264 = vmatprep.subr.mxu0 0.0
    %265 = vmatpush1.msra.mxu0 %v247
    %266 = vmatprep.subr.mxu0 0.0
    %267 = vmatpush1.msra.mxu0 %v246
    %268 = vmatprep.subr.mxu0 0.0
    %269 = vmatpush1.msra.mxu0 %v245
    %270 = vmatprep.subr.mxu0 0.0
    %271 = vmatpush1.msra.mxu0 %v244
    %272 = vmatprep.subr.mxu0 0.0
    %273 = vmatpush1.msra.mxu0 %v243
    %274 = vmatprep.subr.mxu0 0.0
    %275 = vmatpush1.msra.mxu0 %v242
    %276 = vmatprep.subr.mxu0 0.0
    %277 = vmatpush1.msra.mxu0 %v241
    %278 = vmatprep.subr.mxu0 0.0
    %279 = vmatpush1.msra.mxu0 %v240
    %280 = vmatprep.subr.mxu0 0.0
    %281 = vmatpush1.msra.mxu0 %v239
    %282 = vmatprep.subr.mxu0 0.0
    %283 = vmatpush1.msra.mxu0 %v238
    %284 = vmatprep.subr.mxu0 0.0
    %285 = vmatpush1.msra.mxu0 %v237
    %286 = vmatprep.subr.mxu0 0.0
    %287 = vmatpush1.msra.mxu0 %v236
    %288 = vmatprep.subr.mxu0 0.0
    %289 = vmatpush1.msra.mxu0 %v235
    %290 = vmatprep.subr.mxu0 0.0
    %291 = vmatpush2.msra.mxu0 0.0
    %292 = vmatprep.subr.mxu0 0.0
    %293 = vmatpush2.msra.mxu0 0.0
    %294 = vmatprep.subr.mxu0 0.0
    %295 = vmatpush2.msra.mxu0 0.0
    %296 = vmatprep.subr.mxu0 0.0
    %297 = vmatpush2.msra.mxu0 0.0
    %298 = vmatprep.subr.mxu0 0.0
    %299 = vmatpush2.msra.mxu0 0.0
    %300 = vmatprep.subr.mxu0 0.0
    %301 = vmatpush2.msra.mxu0 0.0
    %302 = vmatprep.subr.mxu0 0.0
    %303 = vmatpush2.msra.mxu0 0.0
    %304 = vmatprep.subr.mxu0 0.0
    %305 = vmatpush2.msra.mxu0 0.0
    %306 = vmatprep.subr.mxu0 0.0
    %307 = vmatpush2.msra.mxu0 0.0
    %308 = vmatprep.subr.mxu0 0.0
    %309 = vmatpush2.msra.mxu0 0.0
    %310 = vmatprep.subr.mxu0 0.0
    %311 = vmatpush2.msra.mxu0 0.0
    %312 = vmatprep.subr.mxu0 0.0
    %313 = vmatpush2.msra.mxu0 0.0
    %314 = vmatprep.subr.mxu0 0.0
    %315 = vmatpush2.msra.mxu0 0.0
    %316 = vmatprep.subr.mxu0 0.0
    %317 = vmatpush2.msra.mxu0 0.0
    %318 = vmatprep.subr.mxu0 0.0
    %319 = vmatpush2.msra.mxu0 0.0
    %320 = vmatprep.subr.mxu0 0.0
    %321 = vmatpush2.msra.mxu0 0.0
    %322 = vmatprep.mubr.f32.mxu0 0.0
    %323 = vmatmul.mubr.f32.gmra.mxu0 %v233
    %v324 = vpop.f32.mrf.mxu0
    %v325 = vadd.f32 %v256, %v324
    %v326 = vpop.f32.mrf.mxu0
    %327 = vmatprep.mubr.f32.mxu0 0.0
    %328 = vmatmul.mubr.f32.gmra.mxu0 %v234
    %v329 = vpop.f32.mrf.mxu0
    %v330 = vadd.f32 %v256, %v329
    %v331 = vpop.f32.mrf.mxu0
    %332 = vdwg.mxu0
    %333 = vst [vmem:[#allocation2] sm:$0xff] %v325
    %334 = vst [vmem:[#allocation2 + $0x8] sm:$0xff] %v330
  $region37: #{forward.3} parent=0 // pred_fallthru
    _
  %v335 = vld [vmem:[#allocation2] sm:$0xff]
  %v336 = vld [vmem:[#allocation2 + $0x8] sm:$0xff]
  %v337 = vld [vmem:[%s7] sm:$0xff]
  %v338 = vld [vmem:[%s7 + $0x8] sm:$0xff]
  %v339 = vld [vmem:[%s7 + $0x10] sm:$0xff]
  %v340 = vld [vmem:[%s7 + $0x18] sm:$0xff]
  %v341 = vld [vmem:[%s7 + $0x20] sm:$0xff]
  %v342 = vld [vmem:[%s7 + $0x28] sm:$0xff]
  %v343 = vld [vmem:[%s7 + $0x30] sm:$0xff]
  %v344 = vld [vmem:[%s7 + $0x38] sm:$0xff]
  %v345 = vld [vmem:[%s7 + $0x40] sm:$0xff]
  %v346 = vld [vmem:[%s7 + $0x48] sm:$0xff]
  %v347 = vld [vmem:[%s7 + $0x50] sm:$0xff]
  %v348 = vld [vmem:[%s7 + $0x58] sm:$0xff]
  %v349 = vld [vmem:[%s7 + $0x60] sm:$0xff]
  %v350 = vld [vmem:[%s7 + $0x68] sm:$0xff]
  %v351 = vld [vmem:[%s7 + $0x70] sm:$0xff]
  %v352 = vld [vmem:[%s7 + $0x78] sm:$0xff]
  %353 = vmatprep.subr.mxu0 0.0
  %354 = vmatpush1.xpose.msra.mxu0 %v352
  %355 = vmatprep.subr.mxu0 0.0
  %356 = vmatpush1.xpose.msra.mxu0 %v351
  %357 = vmatprep.subr.mxu0 0.0
  %358 = vmatpush1.xpose.msra.mxu0 %v350
  %359 = vmatprep.subr.mxu0 0.0
  %360 = vmatpush1.xpose.msra.mxu0 %v349
  %361 = vmatprep.subr.mxu0 0.0
  %362 = vmatpush1.xpose.msra.mxu0 %v348
  %363 = vmatprep.subr.mxu0 0.0
  %364 = vmatpush1.xpose.msra.mxu0 %v347
  %365 = vmatprep.subr.mxu0 0.0
  %366 = vmatpush1.xpose.msra.mxu0 %v346
  %367 = vmatprep.subr.mxu0 0.0
  %368 = vmatpush1.xpose.msra.mxu0 %v345
  %369 = vmatprep.subr.mxu0 0.0
  %370 = vmatpush1.xpose.msra.mxu0 %v344
  %371 = vmatprep.subr.mxu0 0.0
  %372 = vmatpush1.xpose.msra.mxu0 %v343
  %373 = vmatprep.subr.mxu0 0.0
  %374 = vmatpush1.xpose.msra.mxu0 %v342
  %375 = vmatprep.subr.mxu0 0.0
  %376 = vmatpush1.xpose.msra.mxu0 %v341
  %377 = vmatprep.subr.mxu0 0.0
  %378 = vmatpush1.xpose.msra.mxu0 %v340
  %379 = vmatprep.subr.mxu0 0.0
  %380 = vmatpush1.xpose.msra.mxu0 %v339
  %381 = vmatprep.subr.mxu0 0.0
  %382 = vmatpush1.xpose.msra.mxu0 %v338
  %383 = vmatprep.subr.mxu0 0.0
  %384 = vmatpush1.xpose.msra.mxu0 %v337
  %385 = vmatprep.subr.mxu0 0.0
  %386 = vmatpush2.xpose.msra.mxu0 0.0
  %387 = vmatprep.subr.mxu0 0.0
  %388 = vmatpush2.xpose.msra.mxu0 0.0
  %389 = vmatprep.subr.mxu0 0.0
  %390 = vmatpush2.xpose.msra.mxu0 0.0
  %391 = vmatprep.subr.mxu0 0.0
  %392 = vmatpush2.xpose.msra.mxu0 0.0
  %393 = vmatprep.subr.mxu0 0.0
  %394 = vmatpush2.xpose.msra.mxu0 0.0
  %395 = vmatprep.subr.mxu0 0.0
  %396 = vmatpush2.xpose.msra.mxu0 0.0
  %397 = vmatprep.subr.mxu0 0.0
  %398 = vmatpush2.xpose.msra.mxu0 0.0
  %399 = vmatprep.subr.mxu0 0.0
  %400 = vmatpush2.xpose.msra.mxu0 0.0
  %401 = vmatprep.subr.mxu0 0.0
  %402 = vmatpush2.xpose.msra.mxu0 0.0
  %403 = vmatprep.subr.mxu0 0.0
  %404 = vmatpush2.xpose.msra.mxu0 0.0
  %405 = vmatprep.subr.mxu0 0.0
  %406 = vmatpush2.xpose.msra.mxu0 0.0
  %407 = vmatprep.subr.mxu0 0.0
  %408 = vmatpush2.xpose.msra.mxu0 0.0
  %409 = vmatprep.subr.mxu0 0.0
  %410 = vmatpush2.xpose.msra.mxu0 0.0
  %411 = vmatprep.subr.mxu0 0.0
  %412 = vmatpush2.xpose.msra.mxu0 0.0
  %413 = vmatprep.subr.mxu0 0.0
  %414 = vmatpush2.xpose.msra.mxu0 0.0
  %415 = vmatprep.subr.mxu0 0.0
  %416 = vmatpush2.xpose.msra.mxu0 0.0
  %417 = vmatprep.mubr.f32.mxu0 0.0
  %418 = vmatmul.mubr.f32.gmra.mxu0 %v335
  %v419 = vpop.f32.mrf.mxu0
  %v420 = vadd.f32 0.0, %v419
  %v421 = vpop.f32.mrf.mxu0
  %422 = vmatprep.mubr.f32.mxu0 0.0
  %423 = vmatmul.mubr.f32.gmra.mxu0 %v336
  %v424 = vpop.f32.mrf.mxu0
  %v425 = vadd.f32 0.0, %v424
  %v426 = vpop.f32.mrf.mxu0
  %427 = vdwg.mxu0
  %428 = vst [vmem:[%s8] sm:$0xff] %v420
  %429 = vst [vmem:[%s8 + $0x8] sm:$0xff] %v425
  // Predicated region
  $region38: #{forward.3} parent=0 // pred_check
    _
  $region39: #{forward.3} parent=0 // pred_check_branch
    %431 = sbr.rel (0) target = $region41
  $region40: #{forward.3} parent=0 // pred_region
    _
  $region41: #{forward.3} parent=0 // pred_fallthru
    _
  // Predicated region
  $region42: #{forward.3} parent=0 // pred_check
    _
  $region43: #{forward.3} parent=0 // pred_check_branch
    %433 = sbr.rel (0) target = $region45
  $region44: #{forward.3} parent=0 // pred_region
    _
  $region45: #{forward.3} parent=0 // pred_fallthru
    _

// kernel: forward.2
$region0: #{forward.2}
  #allocation0 [shape = 'u32[]', space=smem, size = 0x4, offset = 0x4, fixed_abs, tag = 'smem constant byte address 0x4 - core index']
  #allocation1 [shape = 'u32[144,128]{1,0:T(1,128)}', space=vmem, size = 0x12000, scoped, tag = 'internal scratch']
  #allocation2 [shape = 'f32[2,8,128]{2,1,0:T(8,128)}', space=vmem, size = 0x2000, scoped, tag = 'scratch operand']
  %s0 = inlined_call_operand.vmem [shape: f32[2,8,128], index: 0, kind: input, shape index: {}]
  %s1 = inlined_call_operand.vmem [shape: f32[128,128], index: 1, kind: input, shape index: {}]
  %s2 = inlined_call_operand.hbm [shape: f32[128,128], index: 2, kind: input, shape index: {}]
  %s3 = inlined_call_operand.vmem [shape: f32[1,128], index: 3, kind: input, shape index: {}]
  %s4 = inlined_call_operand.hbm [shape: f32[128,128], index: 4, kind: input, shape index: {}]
  %s5 = inlined_call_operand.hbm [shape: f32[128,128], index: 5, kind: input, shape index: {}]
  %s6 = inlined_call_operand.vmem [shape: f32[1,128], index: 6, kind: input, shape index: {}]
  %s7 = inlined_call_operand.vmem [shape: f32[2,8,128], index: 7, kind: output, shape index: {}]
  %s8 = sld [smem:[#allocation0]]
  $region50: #{forward.2} parent=0
    _
  %s10 = ssub.s32 1, %s8
  %s11 = scalar_select 0, %s10, %s8
  $region1: #{forward.2} parent=0
    #allocation3 [shape = 'u8[65536]{0}', space=vmem, size = 0x10000, scoped, tag = 'input window, operand 2, single buffered']
    #allocation4 [shape = 's32[1]{0}', space=sflag, size = 0x4, scoped, tag = 'scoped memory for forward.2']
    #allocation5 [shape = 'u8[65536]{0}', space=vmem, size = 0x10000, scoped, tag = 'input window, operand 4, single buffered']
    #allocation6 [shape = 's32[1]{0}', space=sflag, size = 0x4, scoped, tag = 'scoped memory for forward.2']
    #allocation7 [shape = 'u8[65536]{0}', space=vmem, size = 0x10000, scoped, tag = 'input window, operand 5, single buffered']
    %12 = vsyncpa [#allocation4], 0
    %13 = vsyncpa [#allocation6], 0
    // Predicated region
    $region2: #{forward.2} parent=1 // pred_check
      _
    $region3: #{forward.2} parent=1 // pred_check_branch
      %15 = sbr.rel (0) target = $region5
    $region4: #{forward.2} parent=1 // pred_region
      _
    $region5: #{forward.2} parent=1 // pred_fallthru
      _
    // Predicated region
    $region6: #{forward.2} parent=1 // pred_check
      _
    $region7: #{forward.2} parent=1 // pred_check_branch
      %17 = sbr.rel (0) target = $region9
    $region8: #{forward.2} parent=1 // pred_region
      _
    $region9: #{forward.2} parent=1 // pred_fallthru
      _
    // Predicated region
    $region10: #{forward.2} parent=1 // pred_check
      _
    $region11: #{forward.2} parent=1 // pred_check_branch
      %19 = sbr.rel (0) target = $region13
    $region12: #{forward.2} parent=1 // pred_region
      %s21 = ssub.s32 2048, 2048
      %22 = vsyncadd [#allocation4], %s21
      %s23 = sshll.u32 [#allocation3], 4
      %s24 = int_to_ptr.vmem [resolvable:$true] %s23
      %29 = dma.hbm_to_vmem [thread:$0]  %s2, 2048, %s24, [#allocation4], 128, 128, 8
    $region13: #{forward.2} parent=1 // pred_fallthru
      _
    // Predicated region
    $region14: #{forward.2} parent=1 // pred_check
      _
    $region15: #{forward.2} parent=1 // pred_check_branch
      %31 = sbr.rel (0) target = $region17
    $region16: #{forward.2} parent=1 // pred_region
      _
    $region17: #{forward.2} parent=1 // pred_fallthru
      _
    // Predicated region
    $region18: #{forward.2} parent=1 // pred_check
      _
    $region19: #{forward.2} parent=1 // pred_check_branch
      %33 = sbr.rel (0) target = $region21
    $region20: #{forward.2} parent=1 // pred_region
      %s35 = ssub.s32 2048, 2048
      %36 = vsyncadd [#allocation6], %s35
      %s37 = sshll.u32 [#allocation5], 4
      %s38 = int_to_ptr.vmem [resolvable:$true] %s37
      %43 = dma.hbm_to_vmem [thread:$0]  %s4, 2048, %s38, [#allocation6], 128, 128, 8
    $region21: #{forward.2} parent=1 // pred_fallthru
      _
    // Predicated region
    $region22: #{forward.2} parent=1 // pred_check
      _
    $region23: #{forward.2} parent=1 // pred_check_branch
      %45 = sbr.rel (0) target = $region25
    $region24: #{forward.2} parent=1 // pred_region
      %s47 = ssub.s32 2048, 2048
      %48 = vsyncadd [#allocation6], %s47
      %s49 = sshll.u32 [#allocation7], 4
      %s50 = int_to_ptr.vmem [resolvable:$true] %s49
      %55 = dma.hbm_to_vmem [thread:$0]  %s5, 2048, %s50, [#allocation6], 128, 128, 8
    $region25: #{forward.2} parent=1 // pred_fallthru
      _
    // Predicated region
    $region26: #{forward.2} parent=1 // pred_check
      _
    $region27: #{forward.2} parent=1 // pred_check_branch
      %57 = sbr.rel (0) target = $region29
    $region28: #{forward.2} parent=1 // pred_region
      _
    $region29: #{forward.2} parent=1 // pred_fallthru
      _
    // Predicated region
    $region30: #{forward.2} parent=1 // pred_check
      _
    $region31: #{forward.2} parent=1 // pred_check_branch
      %59 = sbr.rel (0) target = $region33
    $region32: #{forward.2} parent=1 // pred_region
      %60 = dma.done [#allocation4], 2048
    $region33: #{forward.2} parent=1 // pred_fallthru
      _
    // Predicated region
    $region34: #{forward.2} parent=1 // pred_check
      _
    $region35: #{forward.2} parent=1 // pred_check_branch
      %62 = sbr.rel (0) target = $region37
    $region36: #{forward.2} parent=1 // pred_region
      %63 = dma.done [#allocation6], 2048
    $region37: #{forward.2} parent=1 // pred_fallthru
      _
    // Predicated region
    $region38: #{forward.2} parent=1 // pred_check
      _
    $region39: #{forward.2} parent=1 // pred_check_branch
      %65 = sbr.rel (0) target = $region41
    $region40: #{forward.2} parent=1 // pred_region
      %66 = dma.done [#allocation6], 2048
    $region41: #{forward.2} parent=1 // pred_fallthru
      _
    %v67 = vld [vmem:[%s0] sm:$0xff]
    %v68 = vld [vmem:[%s0 + $0x8] sm:$0xff]
    %v69 = vld [vmem:[%s1] sm:$0xff]
    %v70 = vld [vmem:[%s1 + $0x8] sm:$0xff]
    %v71 = vld [vmem:[%s1 + $0x10] sm:$0xff]
    %v72 = vld [vmem:[%s1 + $0x18] sm:$0xff]
    %v73 = vld [vmem:[%s1 + $0x20] sm:$0xff]
    %v74 = vld [vmem:[%s1 + $0x28] sm:$0xff]
    %v75 = vld [vmem:[%s1 + $0x30] sm:$0xff]
    %v76 = vld [vmem:[%s1 + $0x38] sm:$0xff]
    %v77 = vld [vmem:[%s1 + $0x40] sm:$0xff]
    %v78 = vld [vmem:[%s1 + $0x48] sm:$0xff]
    %v79 = vld [vmem:[%s1 + $0x50] sm:$0xff]
    %v80 = vld [vmem:[%s1 + $0x58] sm:$0xff]
    %v81 = vld [vmem:[%s1 + $0x60] sm:$0xff]
    %v82 = vld [vmem:[%s1 + $0x68] sm:$0xff]
    %v83 = vld [vmem:[%s1 + $0x70] sm:$0xff]
    %v84 = vld [vmem:[%s1 + $0x78] sm:$0xff]
    %v85 = vld [vmem:[%s3] sm:$0x1]
    %v87 = vlaneseq
    %v88 = vshrl.u32 %v87, 7
    %v89 = vsub.s32 0, %v88
    %v90 = vrot.slane %v85, %v89
    %92 = vmatprep.subr.mxu0 0.0
    %93 = vmatpush1.msra.mxu0 %v84
    %94 = vmatprep.subr.mxu0 0.0
    %95 = vmatpush1.msra.mxu0 %v83
    %96 = vmatprep.subr.mxu0 0.0
    %97 = vmatpush1.msra.mxu0 %v82
    %98 = vmatprep.subr.mxu0 0.0
    %99 = vmatpush1.msra.mxu0 %v81
    %100 = vmatprep.subr.mxu0 0.0
    %101 = vmatpush1.msra.mxu0 %v80
    %102 = vmatprep.subr.mxu0 0.0
    %103 = vmatpush1.msra.mxu0 %v79
    %104 = vmatprep.subr.mxu0 0.0
    %105 = vmatpush1.msra.mxu0 %v78
    %106 = vmatprep.subr.mxu0 0.0
    %107 = vmatpush1.msra.mxu0 %v77
    %108 = vmatprep.subr.mxu0 0.0
    %109 = vmatpush1.msra.mxu0 %v76
    %110 = vmatprep.subr.mxu0 0.0
    %111 = vmatpush1.msra.mxu0 %v75
    %112 = vmatprep.subr.mxu0 0.0
    %113 = vmatpush1.msra.mxu0 %v74
    %114 = vmatprep.subr.mxu0 0.0
    %115 = vmatpush1.msra.mxu0 %v73
    %116 = vmatprep.subr.mxu0 0.0
    %117 = vmatpush1.msra.mxu0 %v72
    %118 = vmatprep.subr.mxu0 0.0
    %119 = vmatpush1.msra.mxu0 %v71
    %120 = vmatprep.subr.mxu0 0.0
    %121 = vmatpush1.msra.mxu0 %v70
    %122 = vmatprep.subr.mxu0 0.0
    %123 = vmatpush1.msra.mxu0 %v69
    %124 = vmatprep.subr.mxu0 0.0
    %125 = vmatpush2.msra.mxu0 0.0
    %126 = vmatprep.subr.mxu0 0.0
    %127 = vmatpush2.msra.mxu0 0.0
    %128 = vmatprep.subr.mxu0 0.0
    %129 = vmatpush2.msra.mxu0 0.0
    %130 = vmatprep.subr.mxu0 0.0
    %131 = vmatpush2.msra.mxu0 0.0
    %132 = vmatprep.subr.mxu0 0.0
    %133 = vmatpush2.msra.mxu0 0.0
    %134 = vmatprep.subr.mxu0 0.0
    %135 = vmatpush2.msra.mxu0 0.0
    %136 = vmatprep.subr.mxu0 0.0
    %137 = vmatpush2.msra.mxu0 0.0
    %138 = vmatprep.subr.mxu0 0.0
    %139 = vmatpush2.msra.mxu0 0.0
    %140 = vmatprep.subr.mxu0 0.0
    %141 = vmatpush2.msra.mxu0 0.0
    %142 = vmatprep.subr.mxu0 0.0
    %143 = vmatpush2.msra.mxu0 0.0
    %144 = vmatprep.subr.mxu0 0.0
    %145 = vmatpush2.msra.mxu0 0.0
    %146 = vmatprep.subr.mxu0 0.0
    %147 = vmatpush2.msra.mxu0 0.0
    %148 = vmatprep.subr.mxu0 0.0
    %149 = vmatpush2.msra.mxu0 0.0
    %150 = vmatprep.subr.mxu0 0.0
    %151 = vmatpush2.msra.mxu0 0.0
    %152 = vmatprep.subr.mxu0 0.0
    %153 = vmatpush2.msra.mxu0 0.0
    %154 = vmatprep.subr.mxu0 0.0
    %155 = vmatpush2.msra.mxu0 0.0
    %156 = vmatprep.mubr.f32.mxu0 0.0
    %157 = vmatmul.mubr.f32.gmra.mxu0 %v67
    %v158 = vpop.f32.mrf.mxu0
    %v159 = vadd.f32 %v90, %v158
    %v160 = vpop.f32.mrf.mxu0
    %161 = vmatprep.mubr.f32.mxu0 0.0
    %162 = vmatmul.mubr.f32.gmra.mxu0 %v68
    %v163 = vpop.f32.mrf.mxu0
    %v164 = vadd.f32 %v90, %v163
    %v165 = vpop.f32.mrf.mxu0
    %166 = vdwg.mxu0
    %167 = vst [vmem:[#allocation2] sm:$0xff] %v159
    %168 = vst [vmem:[#allocation2 + $0x8] sm:$0xff] %v164
    %v169 = vld [vmem:[#allocation3] sm:$0xff]
    %v170 = vld [vmem:[#allocation3 + $0x8] sm:$0xff]
    %v171 = vld [vmem:[#allocation3 + $0x10] sm:$0xff]
    %v172 = vld [vmem:[#allocation3 + $0x18] sm:$0xff]
    %v173 = vld [vmem:[#allocation3 + $0x20] sm:$0xff]
    %v174 = vld [vmem:[#allocation3 + $0x28] sm:$0xff]
    %v175 = vld [vmem:[#allocation3 + $0x30] sm:$0xff]
    %v176 = vld [vmem:[#allocation3 + $0x38] sm:$0xff]
    %v177 = vld [vmem:[#allocation3 + $0x40] sm:$0xff]
    %v178 = vld [vmem:[#allocation3 + $0x48] sm:$0xff]
    %v179 = vld [vmem:[#allocation3 + $0x50] sm:$0xff]
    %v180 = vld [vmem:[#allocation3 + $0x58] sm:$0xff]
    %v181 = vld [vmem:[#allocation3 + $0x60] sm:$0xff]
    %v182 = vld [vmem:[#allocation3 + $0x68] sm:$0xff]
    %v183 = vld [vmem:[#allocation3 + $0x70] sm:$0xff]
    %v184 = vld [vmem:[#allocation3 + $0x78] sm:$0xff]
    %v185 = vld [vmem:[#allocation2] sm:$0x1]
    %v186 = vld [vmem:[#allocation2 + $0x8] sm:$0x1]
    %187 = vmatprep.subr.mxu0 0.0
    %188 = vmatpush1.msra.mxu0 %v184
    %189 = vmatprep.subr.mxu0 0.0
    %190 = vmatpush1.msra.mxu0 %v183
    %191 = vmatprep.subr.mxu0 0.0
    %192 = vmatpush1.msra.mxu0 %v182
    %193 = vmatprep.subr.mxu0 0.0
    %194 = vmatpush1.msra.mxu0 %v181
    %195 = vmatprep.subr.mxu0 0.0
    %196 = vmatpush1.msra.mxu0 %v180
    %197 = vmatprep.subr.mxu0 0.0
    %198 = vmatpush1.msra.mxu0 %v179
    %199 = vmatprep.subr.mxu0 0.0
    %200 = vmatpush1.msra.mxu0 %v178
    %201 = vmatprep.subr.mxu0 0.0
    %202 = vmatpush1.msra.mxu0 %v177
    %203 = vmatprep.subr.mxu0 0.0
    %204 = vmatpush1.msra.mxu0 %v176
    %205 = vmatprep.subr.mxu0 0.0
    %206 = vmatpush1.msra.mxu0 %v175
    %207 = vmatprep.subr.mxu0 0.0
    %208 = vmatpush1.msra.mxu0 %v174
    %209 = vmatprep.subr.mxu0 0.0
    %210 = vmatpush1.msra.mxu0 %v173
    %211 = vmatprep.subr.mxu0 0.0
    %212 = vmatpush1.msra.mxu0 %v172
    %213 = vmatprep.subr.mxu0 0.0
    %214 = vmatpush1.msra.mxu0 %v171
    %215 = vmatprep.subr.mxu0 0.0
    %216 = vmatpush1.msra.mxu0 %v170
    %217 = vmatprep.subr.mxu0 0.0
    %218 = vmatpush1.msra.mxu0 %v169
    %219 = vmatprep.subr.mxu0 0.0
    %220 = vmatpush2.msra.mxu0 0.0
    %221 = vmatprep.subr.mxu0 0.0
    %222 = vmatpush2.msra.mxu0 0.0
    %223 = vmatprep.subr.mxu0 0.0
    %224 = vmatpush2.msra.mxu0 0.0
    %225 = vmatprep.subr.mxu0 0.0
    %226 = vmatpush2.msra.mxu0 0.0
    %227 = vmatprep.subr.mxu0 0.0
    %228 = vmatpush2.msra.mxu0 0.0
    %229 = vmatprep.subr.mxu0 0.0
    %230 = vmatpush2.msra.mxu0 0.0
    %231 = vmatprep.subr.mxu0 0.0
    %232 = vmatpush2.msra.mxu0 0.0
    %233 = vmatprep.subr.mxu0 0.0
    %234 = vmatpush2.msra.mxu0 0.0
    %235 = vmatprep.subr.mxu0 0.0
    %236 = vmatpush2.msra.mxu0 0.0
    %237 = vmatprep.subr.mxu0 0.0
    %238 = vmatpush2.msra.mxu0 0.0
    %239 = vmatprep.subr.mxu0 0.0
    %240 = vmatpush2.msra.mxu0 0.0
    %241 = vmatprep.subr.mxu0 0.0
    %242 = vmatpush2.msra.mxu0 0.0
    %243 = vmatprep.subr.mxu0 0.0
    %244 = vmatpush2.msra.mxu0 0.0
    %245 = vmatprep.subr.mxu0 0.0
    %246 = vmatpush2.msra.mxu0 0.0
    %247 = vmatprep.subr.mxu0 0.0
    %248 = vmatpush2.msra.mxu0 0.0
    %249 = vmatprep.subr.mxu0 0.0
    %250 = vmatpush2.msra.mxu0 0.0
    %251 = vmatprep.mubr.f32.mxu0 0.0
    %252 = vmatmul.mubr.f32.gmra.mxu0 0.0
    %v253 = vpop.f32.mrf.mxu0
    %v254 = vadd.f32 0.0, %v253
    %v255 = vpop.f32.mrf.mxu0
    %256 = vdwg.mxu0
    %v258 = vrot.slane %v254, 1
    %v261 = vadd.f32 %v185, %v254
    %v262 = vadd.f32 %v186, %v258
    %v263 = vtanh.pop %v261
    %v264 = vtanh.pop %v262
    %265 = vst [vmem:[#allocation2] sm:$0x1] %v263
    %266 = vst [vmem:[#allocation2 + $0x8] sm:$0x1] %v264
    %v267 = vld [vmem:[#allocation2 + $0x1] sm:$0x1]
    %v268 = vld [vmem:[#allocation2 + $0x9] sm:$0x1]
    %v271 = vrot.slane %v264, 7
    %vm272 = vcmask 1041409
    %v273 = vsel %vm272, %v271, %v263
    %275 = vmatprep.subr.mxu0 0.0
    %276 = vmatpush1.msra.mxu0 %v184
    %277 = vmatprep.subr.mxu0 0.0
    %278 = vmatpush1.msra.mxu0 %v183
    %279 = vmatprep.subr.mxu0 0.0
    %280 = vmatpush1.msra.mxu0 %v182
    %281 = vmatprep.subr.mxu0 0.0
    %282 = vmatpush1.msra.mxu0 %v181
    %283 = vmatprep.subr.mxu0 0.0
    %284 = vmatpush1.msra.mxu0 %v180
    %285 = vmatprep.subr.mxu0 0.0
    %286 = vmatpush1.msra.mxu0 %v179
    %287 = vmatprep.subr.mxu0 0.0
    %288 = vmatpush1.msra.mxu0 %v178
    %289 = vmatprep.subr.mxu0 0.0
    %290 = vmatpush1.msra.mxu0 %v177
    %291 = vmatprep.subr.mxu0 0.0
    %292 = vmatpush1.msra.mxu0 %v176
    %293 = vmatprep.subr.mxu0 0.0
    %294 = vmatpush1.msra.mxu0 %v175
    %295 = vmatprep.subr.mxu0 0.0
    %296 = vmatpush1.msra.mxu0 %v174
    %297 = vmatprep.subr.mxu0 0.0
    %298 = vmatpush1.msra.mxu0 %v173
    %299 = vmatprep.subr.mxu0 0.0
    %300 = vmatpush1.msra.mxu0 %v172
    %301 = vmatprep.subr.mxu0 0.0
    %302 = vmatpush1.msra.mxu0 %v171
    %303 = vmatprep.subr.mxu0 0.0
    %304 = vmatpush1.msra.mxu0 %v170
    %305 = vmatprep.subr.mxu0 0.0
    %306 = vmatpush1.msra.mxu0 %v169
    %307 = vmatprep.subr.mxu0 0.0
    %308 = vmatpush2.msra.mxu0 0.0
    %309 = vmatprep.subr.mxu0 0.0
    %310 = vmatpush2.msra.mxu0 0.0
    %311 = vmatprep.subr.mxu0 0.0
    %312 = vmatpush2.msra.mxu0 0.0
    %313 = vmatprep.subr.mxu0 0.0
    %314 = vmatpush2.msra.mxu0 0.0
    %315 = vmatprep.subr.mxu0 0.0
    %316 = vmatpush2.msra.mxu0 0.0
    %317 = vmatprep.subr.mxu0 0.0
    %318 = vmatpush2.msra.mxu0 0.0
    %319 = vmatprep.subr.mxu0 0.0
    %320 = vmatpush2.msra.mxu0 0.0
    %321 = vmatprep.subr.mxu0 0.0
    %322 = vmatpush2.msra.mxu0 0.0
    %323 = vmatprep.subr.mxu0 0.0
    %324 = vmatpush2.msra.mxu0 0.0
    %325 = vmatprep.subr.mxu0 0.0
    %326 = vmatpush2.msra.mxu0 0.0
    %327 = vmatprep.subr.mxu0 0.0
    %328 = vmatpush2.msra.mxu0 0.0
    %329 = vmatprep.subr.mxu0 0.0
    %330 = vmatpush2.msra.mxu0 0.0
    %331 = vmatprep.subr.mxu0 0.0
    %332 = vmatpush2.msra.mxu0 0.0
    %333 = vmatprep.subr.mxu0 0.0
    %334 = vmatpush2.msra.mxu0 0.0
    %335 = vmatprep.subr.mxu0 0.0
    %336 = vmatpush2.msra.mxu0 0.0
    %337 = vmatprep.subr.mxu0 0.0
    %338 = vmatpush2.msra.mxu0 0.0
    %339 = vmatprep.mubr.f32.mxu0 0.0
    %340 = vmatmul.mubr.f32.gmra.mxu0 %v273
    %v341 = vpop.f32.mrf.mxu0
    %v342 = vadd.f32 0.0, %v341
    %v343 = vpop.f32.mrf.mxu0
    %344 = vdwg.mxu0
    %v346 = vrot.slane %v342, 1
    %v349 = vadd.f32 %v267, %v342
    %v350 = vadd.f32 %v268, %v346
    %v351 = vtanh.pop %v349
    %v352 = vtanh.pop %v350
    %353 = vst [vmem:[#allocation2 + $0x1] sm:$0x1] %v351
    %354 = vst [vmem:[#allocation2 + $0x9] sm:$0x1] %v352
    %v355 = vld [vmem:[#allocation2 + $0x2] sm:$0x1]
    %v356 = vld [vmem:[#allocation2 + $0xa] sm:$0x1]
    %v359 = vrot.slane %v352, 7
    %v360 = vsel %vm272, %v359, %v351
    %362 = vmatprep.subr.mxu0 0.0
    %363 = vmatpush1.msra.mxu0 %v184
    %364 = vmatprep.subr.mxu0 0.0
    %365 = vmatpush1.msra.mxu0 %v183
    %366 = vmatprep.subr.mxu0 0.0
    %367 = vmatpush1.msra.mxu0 %v182
    %368 = vmatprep.subr.mxu0 0.0
    %369 = vmatpush1.msra.mxu0 %v181
    %370 = vmatprep.subr.mxu0 0.0
    %371 = vmatpush1.msra.mxu0 %v180
    %372 = vmatprep.subr.mxu0 0.0
    %373 = vmatpush1.msra.mxu0 %v179
    %374 = vmatprep.subr.mxu0 0.0
    %375 = vmatpush1.msra.mxu0 %v178
    %376 = vmatprep.subr.mxu0 0.0
    %377 = vmatpush1.msra.mxu0 %v177
    %378 = vmatprep.subr.mxu0 0.0
    %379 = vmatpush1.msra.mxu0 %v176
    %380 = vmatprep.subr.mxu0 0.0
    %381 = vmatpush1.msra.mxu0 %v175
    %382 = vmatprep.subr.mxu0 0.0
    %383 = vmatpush1.msra.mxu0 %v174
    %384 = vmatprep.subr.mxu0 0.0
    %385 = vmatpush1.msra.mxu0 %v173
    %386 = vmatprep.subr.mxu0 0.0
    %387 = vmatpush1.msra.mxu0 %v172
    %388 = vmatprep.subr.mxu0 0.0
    %389 = vmatpush1.msra.mxu0 %v171
    %390 = vmatprep.subr.mxu0 0.0
    %391 = vmatpush1.msra.mxu0 %v170
    %392 = vmatprep.subr.mxu0 0.0
    %393 = vmatpush1.msra.mxu0 %v169
    %394 = vmatprep.subr.mxu0 0.0
    %395 = vmatpush2.msra.mxu0 0.0
    %396 = vmatprep.subr.mxu0 0.0
    %397 = vmatpush2.msra.mxu0 0.0
    %398 = vmatprep.subr.mxu0 0.0
    %399 = vmatpush2.msra.mxu0 0.0
    %400 = vmatprep.subr.mxu0 0.0
    %401 = vmatpush2.msra.mxu0 0.0
    %402 = vmatprep.subr.mxu0 0.0
    %403 = vmatpush2.msra.mxu0 0.0
    %404 = vmatprep.subr.mxu0 0.0
    %405 = vmatpush2.msra.mxu0 0.0
    %406 = vmatprep.subr.mxu0 0.0
    %407 = vmatpush2.msra.mxu0 0.0
    %408 = vmatprep.subr.mxu0 0.0
    %409 = vmatpush2.msra.mxu0 0.0
    %410 = vmatprep.subr.mxu0 0.0
    %411 = vmatpush2.msra.mxu0 0.0
    %412 = vmatprep.subr.mxu0 0.0
    %413 = vmatpush2.msra.mxu0 0.0
    %414 = vmatprep.subr.mxu0 0.0
    %415 = vmatpush2.msra.mxu0 0.0
    %416 = vmatprep.subr.mxu0 0.0
    %417 = vmatpush2.msra.mxu0 0.0
    %418 = vmatprep.subr.mxu0 0.0
    %419 = vmatpush2.msra.mxu0 0.0
    %420 = vmatprep.subr.mxu0 0.0
    %421 = vmatpush2.msra.mxu0 0.0
    %422 = vmatprep.subr.mxu0 0.0
    %423 = vmatpush2.msra.mxu0 0.0
    %424 = vmatprep.subr.mxu0 0.0
    %425 = vmatpush2.msra.mxu0 0.0
    %426 = vmatprep.mubr.f32.mxu0 0.0
    %427 = vmatmul.mubr.f32.gmra.mxu0 %v360
    %v428 = vpop.f32.mrf.mxu0
    %v429 = vadd.f32 0.0, %v428
    %v430 = vpop.f32.mrf.mxu0
    %431 = vdwg.mxu0
    %v433 = vrot.slane %v429, 1
    %v436 = vadd.f32 %v355, %v429
    %v437 = vadd.f32 %v356, %v433
    %v438 = vtanh.pop %v436
    %v439 = vtanh.pop %v437
    %440 = vst [vmem:[#allocation2 + $0x2] sm:$0x1] %v438
    %441 = vst [vmem:[#allocation2 + $0xa] sm:$0x1] %v439
    %v442 = vld [vmem:[#allocation2 + $0x3] sm:$0x1]
    %v443 = vld [vmem:[#allocation2 + $0xb] sm:$0x1]
    %v446 = vrot.slane %v439, 7
    %v447 = vsel %vm272, %v446, %v438
    %449 = vmatprep.subr.mxu0 0.0
    %450 = vmatpush1.msra.mxu0 %v184
    %451 = vmatprep.subr.mxu0 0.0
    %452 = vmatpush1.msra.mxu0 %v183
    %453 = vmatprep.subr.mxu0 0.0
    %454 = vmatpush1.msra.mxu0 %v182
    %455 = vmatprep.subr.mxu0 0.0
    %456 = vmatpush1.msra.mxu0 %v181
    %457 = vmatprep.subr.mxu0 0.0
    %458 = vmatpush1.msra.mxu0 %v180
    %459 = vmatprep.subr.mxu0 0.0
    %460 = vmatpush1.msra.mxu0 %v179
    %461 = vmatprep.subr.mxu0 0.0
    %462 = vmatpush1.msra.mxu0 %v178
    %463 = vmatprep.subr.mxu0 0.0
    %464 = vmatpush1.msra.mxu0 %v177
    %465 = vmatprep.subr.mxu0 0.0
    %466 = vmatpush1.msra.mxu0 %v176
    %467 = vmatprep.subr.mxu0 0.0
    %468 = vmatpush1.msra.mxu0 %v175
    %469 = vmatprep.subr.mxu0 0.0
    %470 = vmatpush1.msra.mxu0 %v174
    %471 = vmatprep.subr.mxu0 0.0
    %472 = vmatpush1.msra.mxu0 %v173
    %473 = vmatprep.subr.mxu0 0.0
    %474 = vmatpush1.msra.mxu0 %v172
    %475 = vmatprep.subr.mxu0 0.0
    %476 = vmatpush1.msra.mxu0 %v171
    %477 = vmatprep.subr.mxu0 0.0
    %478 = vmatpush1.msra.mxu0 %v170
    %479 = vmatprep.subr.mxu0 0.0
    %480 = vmatpush1.msra.mxu0 %v169
    %481 = vmatprep.subr.mxu0 0.0
    %482 = vmatpush2.msra.mxu0 0.0
    %483 = vmatprep.subr.mxu0 0.0
    %484 = vmatpush2.msra.mxu0 0.0
    %485 = vmatprep.subr.mxu0 0.0
    %486 = vmatpush2.msra.mxu0 0.0
    %487 = vmatprep.subr.mxu0 0.0
    %488 = vmatpush2.msra.mxu0 0.0
    %489 = vmatprep.subr.mxu0 0.0
    %490 = vmatpush2.msra.mxu0 0.0
    %491 = vmatprep.subr.mxu0 0.0
    %492 = vmatpush2.msra.mxu0 0.0
    %493 = vmatprep.subr.mxu0 0.0
    %494 = vmatpush2.msra.mxu0 0.0
    %495 = vmatprep.subr.mxu0 0.0
    %496 = vmatpush2.msra.mxu0 0.0
    %497 = vmatprep.subr.mxu0 0.0
    %498 = vmatpush2.msra.mxu0 0.0
    %499 = vmatprep.subr.mxu0 0.0
    %500 = vmatpush2.msra.mxu0 0.0
    %501 = vmatprep.subr.mxu0 0.0
    %502 = vmatpush2.msra.mxu0 0.0
    %503 = vmatprep.subr.mxu0 0.0
    %504 = vmatpush2.msra.mxu0 0.0
    %505 = vmatprep.subr.mxu0 0.0
    %506 = vmatpush2.msra.mxu0 0.0
    %507 = vmatprep.subr.mxu0 0.0
    %508 = vmatpush2.msra.mxu0 0.0
    %509 = vmatprep.subr.mxu0 0.0
    %510 = vmatpush2.msra.mxu0 0.0
    %511 = vmatprep.subr.mxu0 0.0
    %512 = vmatpush2.msra.mxu0 0.0
    %513 = vmatprep.mubr.f32.mxu0 0.0
    %514 = vmatmul.mubr.f32.gmra.mxu0 %v447
    %v515 = vpop.f32.mrf.mxu0
    %v516 = vadd.f32 0.0, %v515
    %v517 = vpop.f32.mrf.mxu0
    %518 = vdwg.mxu0
    %v520 = vrot.slane %v516, 1
    %v523 = vadd.f32 %v442, %v516
    %v524 = vadd.f32 %v443, %v520
    %v525 = vtanh.pop %v523
    %v526 = vtanh.pop %v524
    %527 = vst [vmem:[#allocation2 + $0x3] sm:$0x1] %v525
    %528 = vst [vmem:[#allocation2 + $0xb] sm:$0x1] %v526
    %v529 = vld [vmem:[#allocation2 + $0x4] sm:$0x1]
    %v530 = vld [vmem:[#allocation2 + $0xc] sm:$0x1]
    %v533 = vrot.slane %v526, 7
    %v534 = vsel %vm272, %v533, %v525
    %536 = vmatprep.subr.mxu0 0.0
    %537 = vmatpush1.msra.mxu0 %v184
    %538 = vmatprep.subr.mxu0 0.0
    %539 = vmatpush1.msra.mxu0 %v183
    %540 = vmatprep.subr.mxu0 0.0
    %541 = vmatpush1.msra.mxu0 %v182
    %542 = vmatprep.subr.mxu0 0.0
    %543 = vmatpush1.msra.mxu0 %v181
    %544 = vmatprep.subr.mxu0 0.0
    %545 = vmatpush1.msra.mxu0 %v180
    %546 = vmatprep.subr.mxu0 0.0
    %547 = vmatpush1.msra.mxu0 %v179
    %548 = vmatprep.subr.mxu0 0.0
    %549 = vmatpush1.msra.mxu0 %v178
    %550 = vmatprep.subr.mxu0 0.0
    %551 = vmatpush1.msra.mxu0 %v177
    %552 = vmatprep.subr.mxu0 0.0
    %553 = vmatpush1.msra.mxu0 %v176
    %554 = vmatprep.subr.mxu0 0.0
    %555 = vmatpush1.msra.mxu0 %v175
    %556 = vmatprep.subr.mxu0 0.0
    %557 = vmatpush1.msra.mxu0 %v174
    %558 = vmatprep.subr.mxu0 0.0
    %559 = vmatpush1.msra.mxu0 %v173
    %560 = vmatprep.subr.mxu0 0.0
    %561 = vmatpush1.msra.mxu0 %v172
    %562 = vmatprep.subr.mxu0 0.0
    %563 = vmatpush1.msra.mxu0 %v171
    %564 = vmatprep.subr.mxu0 0.0
    %565 = vmatpush1.msra.mxu0 %v170
    %566 = vmatprep.subr.mxu0 0.0
    %567 = vmatpush1.msra.mxu0 %v169
    %568 = vmatprep.subr.mxu0 0.0
    %569 = vmatpush2.msra.mxu0 0.0
    %570 = vmatprep.subr.mxu0 0.0
    %571 = vmatpush2.msra.mxu0 0.0
    %572 = vmatprep.subr.mxu0 0.0
    %573 = vmatpush2.msra.mxu0 0.0
    %574 = vmatprep.subr.mxu0 0.0
    %575 = vmatpush2.msra.mxu0 0.0
    %576 = vmatprep.subr.mxu0 0.0
    %577 = vmatpush2.msra.mxu0 0.0
    %578 = vmatprep.subr.mxu0 0.0
    %579 = vmatpush2.msra.mxu0 0.0
    %580 = vmatprep.subr.mxu0 0.0
    %581 = vmatpush2.msra.mxu0 0.0
    %582 = vmatprep.subr.mxu0 0.0
    %583 = vmatpush2.msra.mxu0 0.0
    %584 = vmatprep.subr.mxu0 0.0
    %585 = vmatpush2.msra.mxu0 0.0
    %586 = vmatprep.subr.mxu0 0.0
    %587 = vmatpush2.msra.mxu0 0.0
    %588 = vmatprep.subr.mxu0 0.0
    %589 = vmatpush2.msra.mxu0 0.0
    %590 = vmatprep.subr.mxu0 0.0
    %591 = vmatpush2.msra.mxu0 0.0
    %592 = vmatprep.subr.mxu0 0.0
    %593 = vmatpush2.msra.mxu0 0.0
    %594 = vmatprep.subr.mxu0 0.0
    %595 = vmatpush2.msra.mxu0 0.0
    %596 = vmatprep.subr.mxu0 0.0
    %597 = vmatpush2.msra.mxu0 0.0
    %598 = vmatprep.subr.mxu0 0.0
    %599 = vmatpush2.msra.mxu0 0.0
    %600 = vmatprep.mubr.f32.mxu0 0.0
    %601 = vmatmul.mubr.f32.gmra.mxu0 %v534
    %v602 = vpop.f32.mrf.mxu0
    %v603 = vadd.f32 0.0, %v602
    %v604 = vpop.f32.mrf.mxu0
    %605 = vdwg.mxu0
    %v607 = vrot.slane %v603, 1
    %v610 = vadd.f32 %v529, %v603
    %v611 = vadd.f32 %v530, %v607
    %v612 = vtanh.pop %v610
    %v613 = vtanh.pop %v611
    %614 = vst [vmem:[#allocation2 + $0x4] sm:$0x1] %v612
    %615 = vst [vmem:[#allocation2 + $0xc] sm:$0x1] %v613
    %v616 = vld [vmem:[#allocation2 + $0x5] sm:$0x1]
    %v617 = vld [vmem:[#allocation2 + $0xd] sm:$0x1]
    %v620 = vrot.slane %v613, 7
    %v621 = vsel %vm272, %v620, %v612
    %623 = vmatprep.subr.mxu0 0.0
    %624 = vmatpush1.msra.mxu0 %v184
    %625 = vmatprep.subr.mxu0 0.0
    %626 = vmatpush1.msra.mxu0 %v183
    %627 = vmatprep.subr.mxu0 0.0
    %628 = vmatpush1.msra.mxu0 %v182
    %629 = vmatprep.subr.mxu0 0.0
    %630 = vmatpush1.msra.mxu0 %v181
    %631 = vmatprep.subr.mxu0 0.0
    %632 = vmatpush1.msra.mxu0 %v180
    %633 = vmatprep.subr.mxu0 0.0
    %634 = vmatpush1.msra.mxu0 %v179
    %635 = vmatprep.subr.mxu0 0.0
    %636 = vmatpush1.msra.mxu0 %v178
    %637 = vmatprep.subr.mxu0 0.0
    %638 = vmatpush1.msra.mxu0 %v177
    %639 = vmatprep.subr.mxu0 0.0
    %640 = vmatpush1.msra.mxu0 %v176
    %641 = vmatprep.subr.mxu0 0.0
    %642 = vmatpush1.msra.mxu0 %v175
    %643 = vmatprep.subr.mxu0 0.0
    %644 = vmatpush1.msra.mxu0 %v174
    %645 = vmatprep.subr.mxu0 0.0
    %646 = vmatpush1.msra.mxu0 %v173
    %647 = vmatprep.subr.mxu0 0.0
    %648 = vmatpush1.msra.mxu0 %v172
    %649 = vmatprep.subr.mxu0 0.0
    %650 = vmatpush1.msra.mxu0 %v171
    %651 = vmatprep.subr.mxu0 0.0
    %652 = vmatpush1.msra.mxu0 %v170
    %653 = vmatprep.subr.mxu0 0.0
    %654 = vmatpush1.msra.mxu0 %v169
    %655 = vmatprep.subr.mxu0 0.0
    %656 = vmatpush2.msra.mxu0 0.0
    %657 = vmatprep.subr.mxu0 0.0
    %658 = vmatpush2.msra.mxu0 0.0
    %659 = vmatprep.subr.mxu0 0.0
    %660 = vmatpush2.msra.mxu0 0.0
    %661 = vmatprep.subr.mxu0 0.0
    %662 = vmatpush2.msra.mxu0 0.0
    %663 = vmatprep.subr.mxu0 0.0
    %664 = vmatpush2.msra.mxu0 0.0
    %665 = vmatprep.subr.mxu0 0.0
    %666 = vmatpush2.msra.mxu0 0.0
    %667 = vmatprep.subr.mxu0 0.0
    %668 = vmatpush2.msra.mxu0 0.0
    %669 = vmatprep.subr.mxu0 0.0
    %670 = vmatpush2.msra.mxu0 0.0
    %671 = vmatprep.subr.mxu0 0.0
    %672 = vmatpush2.msra.mxu0 0.0
    %673 = vmatprep.subr.mxu0 0.0
    %674 = vmatpush2.msra.mxu0 0.0
    %675 = vmatprep.subr.mxu0 0.0
    %676 = vmatpush2.msra.mxu0 0.0
    %677 = vmatprep.subr.mxu0 0.0
    %678 = vmatpush2.msra.mxu0 0.0
    %679 = vmatprep.subr.mxu0 0.0
    %680 = vmatpush2.msra.mxu0 0.0
    %681 = vmatprep.subr.mxu0 0.0
    %682 = vmatpush2.msra.mxu0 0.0
    %683 = vmatprep.subr.mxu0 0.0
    %684 = vmatpush2.msra.mxu0 0.0
    %685 = vmatprep.subr.mxu0 0.0
    %686 = vmatpush2.msra.mxu0 0.0
    %687 = vmatprep.mubr.f32.mxu0 0.0
    %688 = vmatmul.mubr.f32.gmra.mxu0 %v621
    %v689 = vpop.f32.mrf.mxu0
    %v690 = vadd.f32 0.0, %v689
    %v691 = vpop.f32.mrf.mxu0
    %692 = vdwg.mxu0
    %v694 = vrot.slane %v690, 1
    %v697 = vadd.f32 %v616, %v690
    %v698 = vadd.f32 %v617, %v694
    %v699 = vtanh.pop %v697
    %v700 = vtanh.pop %v698
    %701 = vst [vmem:[#allocation2 + $0x5] sm:$0x1] %v699
    %702 = vst [vmem:[#allocation2 + $0xd] sm:$0x1] %v700
    %v703 = vld [vmem:[#allocation2 + $0x6] sm:$0x1]
    %v704 = vld [vmem:[#allocation2 + $0xe] sm:$0x1]
    %v707 = vrot.slane %v700, 7
    %v708 = vsel %vm272, %v707, %v699
    %710 = vmatprep.subr.mxu0 0.0
    %711 = vmatpush1.msra.mxu0 %v184
    %712 = vmatprep.subr.mxu0 0.0
    %713 = vmatpush1.msra.mxu0 %v183
    %714 = vmatprep.subr.mxu0 0.0
    %715 = vmatpush1.msra.mxu0 %v182
    %716 = vmatprep.subr.mxu0 0.0
    %717 = vmatpush1.msra.mxu0 %v181
    %718 = vmatprep.subr.mxu0 0.0
    %719 = vmatpush1.msra.mxu0 %v180
    %720 = vmatprep.subr.mxu0 0.0
    %721 = vmatpush1.msra.mxu0 %v179
    %722 = vmatprep.subr.mxu0 0.0
    %723 = vmatpush1.msra.mxu0 %v178
    %724 = vmatprep.subr.mxu0 0.0
    %725 = vmatpush1.msra.mxu0 %v177
    %726 = vmatprep.subr.mxu0 0.0
    %727 = vmatpush1.msra.mxu0 %v176
    %728 = vmatprep.subr.mxu0 0.0
    %729 = vmatpush1.msra.mxu0 %v175
    %730 = vmatprep.subr.mxu0 0.0
    %731 = vmatpush1.msra.mxu0 %v174
    %732 = vmatprep.subr.mxu0 0.0
    %733 = vmatpush1.msra.mxu0 %v173
    %734 = vmatprep.subr.mxu0 0.0
    %735 = vmatpush1.msra.mxu0 %v172
    %736 = vmatprep.subr.mxu0 0.0
    %737 = vmatpush1.msra.mxu0 %v171
    %738 = vmatprep.subr.mxu0 0.0
    %739 = vmatpush1.msra.mxu0 %v170
    %740 = vmatprep.subr.mxu0 0.0
    %741 = vmatpush1.msra.mxu0 %v169
    %742 = vmatprep.subr.mxu0 0.0
    %743 = vmatpush2.msra.mxu0 0.0
    %744 = vmatprep.subr.mxu0 0.0
    %745 = vmatpush2.msra.mxu0 0.0
    %746 = vmatprep.subr.mxu0 0.0
    %747 = vmatpush2.msra.mxu0 0.0
    %748 = vmatprep.subr.mxu0 0.0
    %749 = vmatpush2.msra.mxu0 0.0
    %750 = vmatprep.subr.mxu0 0.0
    %751 = vmatpush2.msra.mxu0 0.0
    %752 = vmatprep.subr.mxu0 0.0
    %753 = vmatpush2.msra.mxu0 0.0
    %754 = vmatprep.subr.mxu0 0.0
    %755 = vmatpush2.msra.mxu0 0.0
    %756 = vmatprep.subr.mxu0 0.0
    %757 = vmatpush2.msra.mxu0 0.0
    %758 = vmatprep.subr.mxu0 0.0
    %759 = vmatpush2.msra.mxu0 0.0
    %760 = vmatprep.subr.mxu0 0.0
    %761 = vmatpush2.msra.mxu0 0.0
    %762 = vmatprep.subr.mxu0 0.0
    %763 = vmatpush2.msra.mxu0 0.0
    %764 = vmatprep.subr.mxu0 0.0
    %765 = vmatpush2.msra.mxu0 0.0
    %766 = vmatprep.subr.mxu0 0.0
    %767 = vmatpush2.msra.mxu0 0.0
    %768 = vmatprep.subr.mxu0 0.0
    %769 = vmatpush2.msra.mxu0 0.0
    %770 = vmatprep.subr.mxu0 0.0
    %771 = vmatpush2.msra.mxu0 0.0
    %772 = vmatprep.subr.mxu0 0.0
    %773 = vmatpush2.msra.mxu0 0.0
    %774 = vmatprep.mubr.f32.mxu0 0.0
    %775 = vmatmul.mubr.f32.gmra.mxu0 %v708
    %v776 = vpop.f32.mrf.mxu0
    %v777 = vadd.f32 0.0, %v776
    %v778 = vpop.f32.mrf.mxu0
    %779 = vdwg.mxu0
    %v781 = vrot.slane %v777, 1
    %v784 = vadd.f32 %v703, %v777
    %v785 = vadd.f32 %v704, %v781
    %v786 = vtanh.pop %v784
    %v787 = vtanh.pop %v785
    %788 = vst [vmem:[#allocation2 + $0x6] sm:$0x1] %v786
    %789 = vst [vmem:[#allocation2 + $0xe] sm:$0x1] %v787
    %v790 = vld [vmem:[#allocation2 + $0x7] sm:$0x1]
    %v791 = vld [vmem:[#allocation2 + $0xf] sm:$0x1]
    %v794 = vrot.slane %v787, 7
    %v795 = vsel %vm272, %v794, %v786
    %797 = vmatprep.subr.mxu0 0.0
    %798 = vmatpush1.msra.mxu0 %v184
    %799 = vmatprep.subr.mxu0 0.0
    %800 = vmatpush1.msra.mxu0 %v183
    %801 = vmatprep.subr.mxu0 0.0
    %802 = vmatpush1.msra.mxu0 %v182
    %803 = vmatprep.subr.mxu0 0.0
    %804 = vmatpush1.msra.mxu0 %v181
    %805 = vmatprep.subr.mxu0 0.0
    %806 = vmatpush1.msra.mxu0 %v180
    %807 = vmatprep.subr.mxu0 0.0
    %808 = vmatpush1.msra.mxu0 %v179
    %809 = vmatprep.subr.mxu0 0.0
    %810 = vmatpush1.msra.mxu0 %v178
    %811 = vmatprep.subr.mxu0 0.0
    %812 = vmatpush1.msra.mxu0 %v177
    %813 = vmatprep.subr.mxu0 0.0
    %814 = vmatpush1.msra.mxu0 %v176
    %815 = vmatprep.subr.mxu0 0.0
    %816 = vmatpush1.msra.mxu0 %v175
    %817 = vmatprep.subr.mxu0 0.0
    %818 = vmatpush1.msra.mxu0 %v174
    %819 = vmatprep.subr.mxu0 0.0
    %820 = vmatpush1.msra.mxu0 %v173
    %821 = vmatprep.subr.mxu0 0.0
    %822 = vmatpush1.msra.mxu0 %v172
    %823 = vmatprep.subr.mxu0 0.0
    %824 = vmatpush1.msra.mxu0 %v171
    %825 = vmatprep.subr.mxu0 0.0
    %826 = vmatpush1.msra.mxu0 %v170
    %827 = vmatprep.subr.mxu0 0.0
    %828 = vmatpush1.msra.mxu0 %v169
    %829 = vmatprep.subr.mxu0 0.0
    %830 = vmatpush2.msra.mxu0 0.0
    %831 = vmatprep.subr.mxu0 0.0
    %832 = vmatpush2.msra.mxu0 0.0
    %833 = vmatprep.subr.mxu0 0.0
    %834 = vmatpush2.msra.mxu0 0.0
    %835 = vmatprep.subr.mxu0 0.0
    %836 = vmatpush2.msra.mxu0 0.0
    %837 = vmatprep.subr.mxu0 0.0
    %838 = vmatpush2.msra.mxu0 0.0
    %839 = vmatprep.subr.mxu0 0.0
    %840 = vmatpush2.msra.mxu0 0.0
    %841 = vmatprep.subr.mxu0 0.0
    %842 = vmatpush2.msra.mxu0 0.0
    %843 = vmatprep.subr.mxu0 0.0
    %844 = vmatpush2.msra.mxu0 0.0
    %845 = vmatprep.subr.mxu0 0.0
    %846 = vmatpush2.msra.mxu0 0.0
    %847 = vmatprep.subr.mxu0 0.0
    %848 = vmatpush2.msra.mxu0 0.0
    %849 = vmatprep.subr.mxu0 0.0
    %850 = vmatpush2.msra.mxu0 0.0
    %851 = vmatprep.subr.mxu0 0.0
    %852 = vmatpush2.msra.mxu0 0.0
    %853 = vmatprep.subr.mxu0 0.0
    %854 = vmatpush2.msra.mxu0 0.0
    %855 = vmatprep.subr.mxu0 0.0
    %856 = vmatpush2.msra.mxu0 0.0
    %857 = vmatprep.subr.mxu0 0.0
    %858 = vmatpush2.msra.mxu0 0.0
    %859 = vmatprep.subr.mxu0 0.0
    %860 = vmatpush2.msra.mxu0 0.0
    %861 = vmatprep.mubr.f32.mxu0 0.0
    %862 = vmatmul.mubr.f32.gmra.mxu0 %v795
    %v863 = vpop.f32.mrf.mxu0
    %v864 = vadd.f32 0.0, %v863
    %v865 = vpop.f32.mrf.mxu0
    %866 = vdwg.mxu0
    %v868 = vrot.slane %v864, 1
    %v871 = vadd.f32 %v790, %v864
    %v872 = vadd.f32 %v791, %v868
    %v873 = vtanh.pop %v871
    %v874 = vtanh.pop %v872
    %875 = vst [vmem:[#allocation2 + $0x7] sm:$0x1] %v873
    %876 = vst [vmem:[#allocation2 + $0xf] sm:$0x1] %v874
    %v877 = vld [vmem:[#allocation2] sm:$0xff]
    %v878 = vld [vmem:[#allocation2 + $0x8] sm:$0xff]
    %v879 = vld [vmem:[#allocation5] sm:$0xff]
    %v880 = vld [vmem:[#allocation5 + $0x8] sm:$0xff]
    %v881 = vld [vmem:[#allocation5 + $0x10] sm:$0xff]
    %v882 = vld [vmem:[#allocation5 + $0x18] sm:$0xff]
    %v883 = vld [vmem:[#allocation5 + $0x20] sm:$0xff]
    %v884 = vld [vmem:[#allocation5 + $0x28] sm:$0xff]
    %v885 = vld [vmem:[#allocation5 + $0x30] sm:$0xff]
    %v886 = vld [vmem:[#allocation5 + $0x38] sm:$0xff]
    %v887 = vld [vmem:[#allocation5 + $0x40] sm:$0xff]
    %v888 = vld [vmem:[#allocation5 + $0x48] sm:$0xff]
    %v889 = vld [vmem:[#allocation5 + $0x50] sm:$0xff]
    %v890 = vld [vmem:[#allocation5 + $0x58] sm:$0xff]
    %v891 = vld [vmem:[#allocation5 + $0x60] sm:$0xff]
    %v892 = vld [vmem:[#allocation5 + $0x68] sm:$0xff]
    %v893 = vld [vmem:[#allocation5 + $0x70] sm:$0xff]
    %v894 = vld [vmem:[#allocation5 + $0x78] sm:$0xff]
    %v895 = vld [vmem:[%s6] sm:$0x1]
    %v897 = vlaneseq
    %v898 = vshrl.u32 %v897, 7
    %v899 = vsub.s32 0, %v898
    %v900 = vrot.slane %v895, %v899
    %902 = vmatprep.subr.mxu0 0.0
    %903 = vmatpush1.msra.mxu0 %v894
    %904 = vmatprep.subr.mxu0 0.0
    %905 = vmatpush1.msra.mxu0 %v893
    %906 = vmatprep.subr.mxu0 0.0
    %907 = vmatpush1.msra.mxu0 %v892
    %908 = vmatprep.subr.mxu0 0.0
    %909 = vmatpush1.msra.mxu0 %v891
    %910 = vmatprep.subr.mxu0 0.0
    %911 = vmatpush1.msra.mxu0 %v890
    %912 = vmatprep.subr.mxu0 0.0
    %913 = vmatpush1.msra.mxu0 %v889
    %914 = vmatprep.subr.mxu0 0.0
    %915 = vmatpush1.msra.mxu0 %v888
    %916 = vmatprep.subr.mxu0 0.0
    %917 = vmatpush1.msra.mxu0 %v887
    %918 = vmatprep.subr.mxu0 0.0
    %919 = vmatpush1.msra.mxu0 %v886
    %920 = vmatprep.subr.mxu0 0.0
    %921 = vmatpush1.msra.mxu0 %v885
    %922 = vmatprep.subr.mxu0 0.0
    %923 = vmatpush1.msra.mxu0 %v884
    %924 = vmatprep.subr.mxu0 0.0
    %925 = vmatpush1.msra.mxu0 %v883
    %926 = vmatprep.subr.mxu0 0.0
    %927 = vmatpush1.msra.mxu0 %v882
    %928 = vmatprep.subr.mxu0 0.0
    %929 = vmatpush1.msra.mxu0 %v881
    %930 = vmatprep.subr.mxu0 0.0
    %931 = vmatpush1.msra.mxu0 %v880
    %932 = vmatprep.subr.mxu0 0.0
    %933 = vmatpush1.msra.mxu0 %v879
    %934 = vmatprep.subr.mxu0 0.0
    %935 = vmatpush2.msra.mxu0 0.0
    %936 = vmatprep.subr.mxu0 0.0
    %937 = vmatpush2.msra.mxu0 0.0
    %938 = vmatprep.subr.mxu0 0.0
    %939 = vmatpush2.msra.mxu0 0.0
    %940 = vmatprep.subr.mxu0 0.0
    %941 = vmatpush2.msra.mxu0 0.0
    %942 = vmatprep.subr.mxu0 0.0
    %943 = vmatpush2.msra.mxu0 0.0
    %944 = vmatprep.subr.mxu0 0.0
    %945 = vmatpush2.msra.mxu0 0.0
    %946 = vmatprep.subr.mxu0 0.0
    %947 = vmatpush2.msra.mxu0 0.0
    %948 = vmatprep.subr.mxu0 0.0
    %949 = vmatpush2.msra.mxu0 0.0
    %950 = vmatprep.subr.mxu0 0.0
    %951 = vmatpush2.msra.mxu0 0.0
    %952 = vmatprep.subr.mxu0 0.0
    %953 = vmatpush2.msra.mxu0 0.0
    %954 = vmatprep.subr.mxu0 0.0
    %955 = vmatpush2.msra.mxu0 0.0
    %956 = vmatprep.subr.mxu0 0.0
    %957 = vmatpush2.msra.mxu0 0.0
    %958 = vmatprep.subr.mxu0 0.0
    %959 = vmatpush2.msra.mxu0 0.0
    %960 = vmatprep.subr.mxu0 0.0
    %961 = vmatpush2.msra.mxu0 0.0
    %962 = vmatprep.subr.mxu0 0.0
    %963 = vmatpush2.msra.mxu0 0.0
    %964 = vmatprep.subr.mxu0 0.0
    %965 = vmatpush2.msra.mxu0 0.0
    %966 = vmatprep.mubr.f32.mxu0 0.0
    %967 = vmatmul.mubr.f32.gmra.mxu0 %v877
    %v968 = vpop.f32.mrf.mxu0
    %v969 = vadd.f32 %v900, %v968
    %v970 = vpop.f32.mrf.mxu0
    %971 = vmatprep.mubr.f32.mxu0 0.0
    %972 = vmatmul.mubr.f32.gmra.mxu0 %v878
    %v973 = vpop.f32.mrf.mxu0
    %v974 = vadd.f32 %v900, %v973
    %v975 = vpop.f32.mrf.mxu0
    %976 = vdwg.mxu0
    %977 = vst [vmem:[%s7] sm:$0xff] %v969
    %978 = vst [vmem:[%s7 + $0x8] sm:$0xff] %v974
    %v979 = vld [vmem:[#allocation7] sm:$0xff]
    %v980 = vld [vmem:[#allocation7 + $0x8] sm:$0xff]
    %v981 = vld [vmem:[#allocation7 + $0x10] sm:$0xff]
    %v982 = vld [vmem:[#allocation7 + $0x18] sm:$0xff]
    %v983 = vld [vmem:[#allocation7 + $0x20] sm:$0xff]
    %v984 = vld [vmem:[#allocation7 + $0x28] sm:$0xff]
    %v985 = vld [vmem:[#allocation7 + $0x30] sm:$0xff]
    %v986 = vld [vmem:[#allocation7 + $0x38] sm:$0xff]
    %v987 = vld [vmem:[#allocation7 + $0x40] sm:$0xff]
    %v988 = vld [vmem:[#allocation7 + $0x48] sm:$0xff]
    %v989 = vld [vmem:[#allocation7 + $0x50] sm:$0xff]
    %v990 = vld [vmem:[#allocation7 + $0x58] sm:$0xff]
    %v991 = vld [vmem:[#allocation7 + $0x60] sm:$0xff]
    %v992 = vld [vmem:[#allocation7 + $0x68] sm:$0xff]
    %v993 = vld [vmem:[#allocation7 + $0x70] sm:$0xff]
    %v994 = vld [vmem:[#allocation7 + $0x78] sm:$0xff]
    %v995 = vld [vmem:[%s7] sm:$0x1]
    %v996 = vld [vmem:[%s7 + $0x8] sm:$0x1]
    %997 = vmatprep.subr.mxu0 0.0
    %998 = vmatpush1.msra.mxu0 %v994
    %999 = vmatprep.subr.mxu0 0.0
    %1000 = vmatpush1.msra.mxu0 %v993
    %1001 = vmatprep.subr.mxu0 0.0
    %1002 = vmatpush1.msra.mxu0 %v992
    %1003 = vmatprep.subr.mxu0 0.0
    %1004 = vmatpush1.msra.mxu0 %v991
    %1005 = vmatprep.subr.mxu0 0.0
    %1006 = vmatpush1.msra.mxu0 %v990
    %1007 = vmatprep.subr.mxu0 0.0
    %1008 = vmatpush1.msra.mxu0 %v989
    %1009 = vmatprep.subr.mxu0 0.0
    %1010 = vmatpush1.msra.mxu0 %v988
    %1011 = vmatprep.subr.mxu0 0.0
    %1012 = vmatpush1.msra.mxu0 %v987
    %1013 = vmatprep.subr.mxu0 0.0
    %1014 = vmatpush1.msra.mxu0 %v986
    %1015 = vmatprep.subr.mxu0 0.0
    %1016 = vmatpush1.msra.mxu0 %v985
    %1017 = vmatprep.subr.mxu0 0.0
    %1018 = vmatpush1.msra.mxu0 %v984
    %1019 = vmatprep.subr.mxu0 0.0
    %1020 = vmatpush1.msra.mxu0 %v983
    %1021 = vmatprep.subr.mxu0 0.0
    %1022 = vmatpush1.msra.mxu0 %v982
    %1023 = vmatprep.subr.mxu0 0.0
    %1024 = vmatpush1.msra.mxu0 %v981
    %1025 = vmatprep.subr.mxu0 0.0
    %1026 = vmatpush1.msra.mxu0 %v980
    %1027 = vmatprep.subr.mxu0 0.0
    %1028 = vmatpush1.msra.mxu0 %v979
    %1029 = vmatprep.subr.mxu0 0.0
    %1030 = vmatpush2.msra.mxu0 0.0
    %1031 = vmatprep.subr.mxu0 0.0
    %1032 = vmatpush2.msra.mxu0 0.0
    %1033 = vmatprep.subr.mxu0 0.0
    %1034 = vmatpush2.msra.mxu0 0.0
    %1035 = vmatprep.subr.mxu0 0.0
    %1036 = vmatpush2.msra.mxu0 0.0
    %1037 = vmatprep.subr.mxu0 0.0
    %1038 = vmatpush2.msra.mxu0 0.0
    %1039 = vmatprep.subr.mxu0 0.0
    %1040 = vmatpush2.msra.mxu0 0.0
    %1041 = vmatprep.subr.mxu0 0.0
    %1042 = vmatpush2.msra.mxu0 0.0
    %1043 = vmatprep.subr.mxu0 0.0
    %1044 = vmatpush2.msra.mxu0 0.0
    %1045 = vmatprep.subr.mxu0 0.0
    %1046 = vmatpush2.msra.mxu0 0.0
    %1047 = vmatprep.subr.mxu0 0.0
    %1048 = vmatpush2.msra.mxu0 0.0
    %1049 = vmatprep.subr.mxu0 0.0
    %1050 = vmatpush2.msra.mxu0 0.0
    %1051 = vmatprep.subr.mxu0 0.0
    %1052 = vmatpush2.msra.mxu0 0.0
    %1053 = vmatprep.subr.mxu0 0.0
    %1054 = vmatpush2.msra.mxu0 0.0
    %1055 = vmatprep.subr.mxu0 0.0
    %1056 = vmatpush2.msra.mxu0 0.0
    %1057 = vmatprep.subr.mxu0 0.0
    %1058 = vmatpush2.msra.mxu0 0.0
    %1059 = vmatprep.subr.mxu0 0.0
    %1060 = vmatpush2.msra.mxu0 0.0
    %1061 = vmatprep.mubr.f32.mxu0 0.0
    %1062 = vmatmul.mubr.f32.gmra.mxu0 0.0
    %v1063 = vpop.f32.mrf.mxu0
    %v1064 = vadd.f32 0.0, %v1063
    %v1065 = vpop.f32.mrf.mxu0
    %1066 = vdwg.mxu0
    %v1068 = vrot.slane %v1064, 1
    %v1071 = vadd.f32 %v995, %v1064
    %v1072 = vadd.f32 %v996, %v1068
    %v1073 = vtanh.pop %v1071
    %v1074 = vtanh.pop %v1072
    %1075 = vst [vmem:[%s7] sm:$0x1] %v1073
    %1076 = vst [vmem:[%s7 + $0x8] sm:$0x1] %v1074
    %v1077 = vld [vmem:[%s7 + $0x1] sm:$0x1]
    %v1078 = vld [vmem:[%s7 + $0x9] sm:$0x1]
    %v1081 = vrot.slane %v1074, 7
    %v1082 = vsel %vm272, %v1081, %v1073
    %1084 = vmatprep.subr.mxu0 0.0
    %1085 = vmatpush1.msra.mxu0 %v994
    %1086 = vmatprep.subr.mxu0 0.0
    %1087 = vmatpush1.msra.mxu0 %v993
    %1088 = vmatprep.subr.mxu0 0.0
    %1089 = vmatpush1.msra.mxu0 %v992
    %1090 = vmatprep.subr.mxu0 0.0
    %1091 = vmatpush1.msra.mxu0 %v991
    %1092 = vmatprep.subr.mxu0 0.0
    %1093 = vmatpush1.msra.mxu0 %v990
    %1094 = vmatprep.subr.mxu0 0.0
    %1095 = vmatpush1.msra.mxu0 %v989
    %1096 = vmatprep.subr.mxu0 0.0
    %1097 = vmatpush1.msra.mxu0 %v988
    %1098 = vmatprep.subr.mxu0 0.0
    %1099 = vmatpush1.msra.mxu0 %v987
    %1100 = vmatprep.subr.mxu0 0.0
    %1101 = vmatpush1.msra.mxu0 %v986
    %1102 = vmatprep.subr.mxu0 0.0
    %1103 = vmatpush1.msra.mxu0 %v985
    %1104 = vmatprep.subr.mxu0 0.0
    %1105 = vmatpush1.msra.mxu0 %v984
    %1106 = vmatprep.subr.mxu0 0.0
    %1107 = vmatpush1.msra.mxu0 %v983
    %1108 = vmatprep.subr.mxu0 0.0
    %1109 = vmatpush1.msra.mxu0 %v982
    %1110 = vmatprep.subr.mxu0 0.0
    %1111 = vmatpush1.msra.mxu0 %v981
    %1112 = vmatprep.subr.mxu0 0.0
    %1113 = vmatpush1.msra.mxu0 %v980
    %1114 = vmatprep.subr.mxu0 0.0
    %1115 = vmatpush1.msra.mxu0 %v979
    %1116 = vmatprep.subr.mxu0 0.0
    %1117 = vmatpush2.msra.mxu0 0.0
    %1118 = vmatprep.subr.mxu0 0.0
    %1119 = vmatpush2.msra.mxu0 0.0
    %1120 = vmatprep.subr.mxu0 0.0
    %1121 = vmatpush2.msra.mxu0 0.0
    %1122 = vmatprep.subr.mxu0 0.0
    %1123 = vmatpush2.msra.mxu0 0.0
    %1124 = vmatprep.subr.mxu0 0.0
    %1125 = vmatpush2.msra.mxu0 0.0
    %1126 = vmatprep.subr.mxu0 0.0
    %1127 = vmatpush2.msra.mxu0 0.0
    %1128 = vmatprep.subr.mxu0 0.0
    %1129 = vmatpush2.msra.mxu0 0.0
    %1130 = vmatprep.subr.mxu0 0.0
    %1131 = vmatpush2.msra.mxu0 0.0
    %1132 = vmatprep.subr.mxu0 0.0
    %1133 = vmatpush2.msra.mxu0 0.0
    %1134 = vmatprep.subr.mxu0 0.0
    %1135 = vmatpush2.msra.mxu0 0.0
    %1136 = vmatprep.subr.mxu0 0.0
    %1137 = vmatpush2.msra.mxu0 0.0
    %1138 = vmatprep.subr.mxu0 0.0
    %1139 = vmatpush2.msra.mxu0 0.0
    %1140 = vmatprep.subr.mxu0 0.0
    %1141 = vmatpush2.msra.mxu0 0.0
    %1142 = vmatprep.subr.mxu0 0.0
    %1143 = vmatpush2.msra.mxu0 0.0
    %1144 = vmatprep.subr.mxu0 0.0
    %1145 = vmatpush2.msra.mxu0 0.0
    %1146 = vmatprep.subr.mxu0 0.0
    %1147 = vmatpush2.msra.mxu0 0.0
    %1148 = vmatprep.mubr.f32.mxu0 0.0
    %1149 = vmatmul.mubr.f32.gmra.mxu0 %v1082
    %v1150 = vpop.f32.mrf.mxu0
    %v1151 = vadd.f32 0.0, %v1150
    %v1152 = vpop.f32.mrf.mxu0
    %1153 = vdwg.mxu0
    %v1155 = vrot.slane %v1151, 1
    %v1158 = vadd.f32 %v1077, %v1151
    %v1159 = vadd.f32 %v1078, %v1155
    %v1160 = vtanh.pop %v1158
    %v1161 = vtanh.pop %v1159
    %1162 = vst [vmem:[%s7 + $0x1] sm:$0x1] %v1160
    %1163 = vst [vmem:[%s7 + $0x9] sm:$0x1] %v1161
    %v1164 = vld [vmem:[%s7 + $0x2] sm:$0x1]
    %v1165 = vld [vmem:[%s7 + $0xa] sm:$0x1]
    %v1168 = vrot.slane %v1161, 7
    %v1169 = vsel %vm272, %v1168, %v1160
    %1171 = vmatprep.subr.mxu0 0.0
    %1172 = vmatpush1.msra.mxu0 %v994
    %1173 = vmatprep.subr.mxu0 0.0
    %1174 = vmatpush1.msra.mxu0 %v993
    %1175 = vmatprep.subr.mxu0 0.0
    %1176 = vmatpush1.msra.mxu0 %v992
    %1177 = vmatprep.subr.mxu0 0.0
    %1178 = vmatpush1.msra.mxu0 %v991
    %1179 = vmatprep.subr.mxu0 0.0
    %1180 = vmatpush1.msra.mxu0 %v990
    %1181 = vmatprep.subr.mxu0 0.0
    %1182 = vmatpush1.msra.mxu0 %v989
    %1183 = vmatprep.subr.mxu0 0.0
    %1184 = vmatpush1.msra.mxu0 %v988
    %1185 = vmatprep.subr.mxu0 0.0
    %1186 = vmatpush1.msra.mxu0 %v987
    %1187 = vmatprep.subr.mxu0 0.0
    %1188 = vmatpush1.msra.mxu0 %v986
    %1189 = vmatprep.subr.mxu0 0.0
    %1190 = vmatpush1.msra.mxu0 %v985
    %1191 = vmatprep.subr.mxu0 0.0
    %1192 = vmatpush1.msra.mxu0 %v984
    %1193 = vmatprep.subr.mxu0 0.0
    %1194 = vmatpush1.msra.mxu0 %v983
    %1195 = vmatprep.subr.mxu0 0.0
    %1196 = vmatpush1.msra.mxu0 %v982
    %1197 = vmatprep.subr.mxu0 0.0
    %1198 = vmatpush1.msra.mxu0 %v981
    %1199 = vmatprep.subr.mxu0 0.0
    %1200 = vmatpush1.msra.mxu0 %v980
    %1201 = vmatprep.subr.mxu0 0.0
    %1202 = vmatpush1.msra.mxu0 %v979
    %1203 = vmatprep.subr.mxu0 0.0
    %1204 = vmatpush2.msra.mxu0 0.0
    %1205 = vmatprep.subr.mxu0 0.0
    %1206 = vmatpush2.msra.mxu0 0.0
    %1207 = vmatprep.subr.mxu0 0.0
    %1208 = vmatpush2.msra.mxu0 0.0
    %1209 = vmatprep.subr.mxu0 0.0
    %1210 = vmatpush2.msra.mxu0 0.0
    %1211 = vmatprep.subr.mxu0 0.0
    %1212 = vmatpush2.msra.mxu0 0.0
    %1213 = vmatprep.subr.mxu0 0.0
    %1214 = vmatpush2.msra.mxu0 0.0
    %1215 = vmatprep.subr.mxu0 0.0
    %1216 = vmatpush2.msra.mxu0 0.0
    %1217 = vmatprep.subr.mxu0 0.0
    %1218 = vmatpush2.msra.mxu0 0.0
    %1219 = vmatprep.subr.mxu0 0.0
    %1220 = vmatpush2.msra.mxu0 0.0
    %1221 = vmatprep.subr.mxu0 0.0
    %1222 = vmatpush2.msra.mxu0 0.0
    %1223 = vmatprep.subr.mxu0 0.0
    %1224 = vmatpush2.msra.mxu0 0.0
    %1225 = vmatprep.subr.mxu0 0.0
    %1226 = vmatpush2.msra.mxu0 0.0
    %1227 = vmatprep.subr.mxu0 0.0
    %1228 = vmatpush2.msra.mxu0 0.0
    %1229 = vmatprep.subr.mxu0 0.0
    %1230 = vmatpush2.msra.mxu0 0.0
    %1231 = vmatprep.subr.mxu0 0.0
    %1232 = vmatpush2.msra.mxu0 0.0
    %1233 = vmatprep.subr.mxu0 0.0
    %1234 = vmatpush2.msra.mxu0 0.0
    %1235 = vmatprep.mubr.f32.mxu0 0.0
    %1236 = vmatmul.mubr.f32.gmra.mxu0 %v1169
    %v1237 = vpop.f32.mrf.mxu0
    %v1238 = vadd.f32 0.0, %v1237
    %v1239 = vpop.f32.mrf.mxu0
    %1240 = vdwg.mxu0
    %v1242 = vrot.slane %v1238, 1
    %v1245 = vadd.f32 %v1164, %v1238
    %v1246 = vadd.f32 %v1165, %v1242
    %v1247 = vtanh.pop %v1245
    %v1248 = vtanh.pop %v1246
    %1249 = vst [vmem:[%s7 + $0x2] sm:$0x1] %v1247
    %1250 = vst [vmem:[%s7 + $0xa] sm:$0x1] %v1248
    %v1251 = vld [vmem:[%s7 + $0x3] sm:$0x1]
    %v1252 = vld [vmem:[%s7 + $0xb] sm:$0x1]
    %v1255 = vrot.slane %v1248, 7
    %v1256 = vsel %vm272, %v1255, %v1247
    %1258 = vmatprep.subr.mxu0 0.0
    %1259 = vmatpush1.msra.mxu0 %v994
    %1260 = vmatprep.subr.mxu0 0.0
    %1261 = vmatpush1.msra.mxu0 %v993
    %1262 = vmatprep.subr.mxu0 0.0
    %1263 = vmatpush1.msra.mxu0 %v992
    %1264 = vmatprep.subr.mxu0 0.0
    %1265 = vmatpush1.msra.mxu0 %v991
    %1266 = vmatprep.subr.mxu0 0.0
    %1267 = vmatpush1.msra.mxu0 %v990
    %1268 = vmatprep.subr.mxu0 0.0
    %1269 = vmatpush1.msra.mxu0 %v989
    %1270 = vmatprep.subr.mxu0 0.0
    %1271 = vmatpush1.msra.mxu0 %v988
    %1272 = vmatprep.subr.mxu0 0.0
    %1273 = vmatpush1.msra.mxu0 %v987
    %1274 = vmatprep.subr.mxu0 0.0
    %1275 = vmatpush1.msra.mxu0 %v986
    %1276 = vmatprep.subr.mxu0 0.0
    %1277 = vmatpush1.msra.mxu0 %v985
    %1278 = vmatprep.subr.mxu0 0.0
    %1279 = vmatpush1.msra.mxu0 %v984
    %1280 = vmatprep.subr.mxu0 0.0
    %1281 = vmatpush1.msra.mxu0 %v983
    %1282 = vmatprep.subr.mxu0 0.0
    %1283 = vmatpush1.msra.mxu0 %v982
    %1284 = vmatprep.subr.mxu0 0.0
    %1285 = vmatpush1.msra.mxu0 %v981
    %1286 = vmatprep.subr.mxu0 0.0
    %1287 = vmatpush1.msra.mxu0 %v980
    %1288 = vmatprep.subr.mxu0 0.0
    %1289 = vmatpush1.msra.mxu0 %v979
    %1290 = vmatprep.subr.mxu0 0.0
    %1291 = vmatpush2.msra.mxu0 0.0
    %1292 = vmatprep.subr.mxu0 0.0
    %1293 = vmatpush2.msra.mxu0 0.0
    %1294 = vmatprep.subr.mxu0 0.0
    %1295 = vmatpush2.msra.mxu0 0.0
    %1296 = vmatprep.subr.mxu0 0.0
    %1297 = vmatpush2.msra.mxu0 0.0
    %1298 = vmatprep.subr.mxu0 0.0
    %1299 = vmatpush2.msra.mxu0 0.0
    %1300 = vmatprep.subr.mxu0 0.0
    %1301 = vmatpush2.msra.mxu0 0.0
    %1302 = vmatprep.subr.mxu0 0.0
    %1303 = vmatpush2.msra.mxu0 0.0
    %1304 = vmatprep.subr.mxu0 0.0
    %1305 = vmatpush2.msra.mxu0 0.0
    %1306 = vmatprep.subr.mxu0 0.0
    %1307 = vmatpush2.msra.mxu0 0.0
    %1308 = vmatprep.subr.mxu0 0.0
    %1309 = vmatpush2.msra.mxu0 0.0
    %1310 = vmatprep.subr.mxu0 0.0
    %1311 = vmatpush2.msra.mxu0 0.0
    %1312 = vmatprep.subr.mxu0 0.0
    %1313 = vmatpush2.msra.mxu0 0.0
    %1314 = vmatprep.subr.mxu0 0.0
    %1315 = vmatpush2.msra.mxu0 0.0
    %1316 = vmatprep.subr.mxu0 0.0
    %1317 = vmatpush2.msra.mxu0 0.0
    %1318 = vmatprep.subr.mxu0 0.0
    %1319 = vmatpush2.msra.mxu0 0.0
    %1320 = vmatprep.subr.mxu0 0.0
    %1321 = vmatpush2.msra.mxu0 0.0
    %1322 = vmatprep.mubr.f32.mxu0 0.0
    %1323 = vmatmul.mubr.f32.gmra.mxu0 %v1256
    %v1324 = vpop.f32.mrf.mxu0
    %v1325 = vadd.f32 0.0, %v1324
    %v1326 = vpop.f32.mrf.mxu0
    %1327 = vdwg.mxu0
    %v1329 = vrot.slane %v1325, 1
    %v1332 = vadd.f32 %v1251, %v1325
    %v1333 = vadd.f32 %v1252, %v1329
    %v1334 = vtanh.pop %v1332
    %v1335 = vtanh.pop %v1333
    %1336 = vst [vmem:[%s7 + $0x3] sm:$0x1] %v1334
    %1337 = vst [vmem:[%s7 + $0xb] sm:$0x1] %v1335
    %v1338 = vld [vmem:[%s7 + $0x4] sm:$0x1]
    %v1339 = vld [vmem:[%s7 + $0xc] sm:$0x1]
    %v1342 = vrot.slane %v1335, 7
    %v1343 = vsel %vm272, %v1342, %v1334
    %1345 = vmatprep.subr.mxu0 0.0
    %1346 = vmatpush1.msra.mxu0 %v994
    %1347 = vmatprep.subr.mxu0 0.0
    %1348 = vmatpush1.msra.mxu0 %v993
    %1349 = vmatprep.subr.mxu0 0.0
    %1350 = vmatpush1.msra.mxu0 %v992
    %1351 = vmatprep.subr.mxu0 0.0
    %1352 = vmatpush1.msra.mxu0 %v991
    %1353 = vmatprep.subr.mxu0 0.0
    %1354 = vmatpush1.msra.mxu0 %v990
    %1355 = vmatprep.subr.mxu0 0.0
    %1356 = vmatpush1.msra.mxu0 %v989
    %1357 = vmatprep.subr.mxu0 0.0
    %1358 = vmatpush1.msra.mxu0 %v988
    %1359 = vmatprep.subr.mxu0 0.0
    %1360 = vmatpush1.msra.mxu0 %v987
    %1361 = vmatprep.subr.mxu0 0.0
    %1362 = vmatpush1.msra.mxu0 %v986
    %1363 = vmatprep.subr.mxu0 0.0
    %1364 = vmatpush1.msra.mxu0 %v985
    %1365 = vmatprep.subr.mxu0 0.0
    %1366 = vmatpush1.msra.mxu0 %v984
    %1367 = vmatprep.subr.mxu0 0.0
    %1368 = vmatpush1.msra.mxu0 %v983
    %1369 = vmatprep.subr.mxu0 0.0
    %1370 = vmatpush1.msra.mxu0 %v982
    %1371 = vmatprep.subr.mxu0 0.0
    %1372 = vmatpush1.msra.mxu0 %v981
    %1373 = vmatprep.subr.mxu0 0.0
    %1374 = vmatpush1.msra.mxu0 %v980
    %1375 = vmatprep.subr.mxu0 0.0
    %1376 = vmatpush1.msra.mxu0 %v979
    %1377 = vmatprep.subr.mxu0 0.0
    %1378 = vmatpush2.msra.mxu0 0.0
    %1379 = vmatprep.subr.mxu0 0.0
    %1380 = vmatpush2.msra.mxu0 0.0
    %1381 = vmatprep.subr.mxu0 0.0
    %1382 = vmatpush2.msra.mxu0 0.0
    %1383 = vmatprep.subr.mxu0 0.0
    %1384 = vmatpush2.msra.mxu0 0.0
    %1385 = vmatprep.subr.mxu0 0.0
    %1386 = vmatpush2.msra.mxu0 0.0
    %1387 = vmatprep.subr.mxu0 0.0
    %1388 = vmatpush2.msra.mxu0 0.0
    %1389 = vmatprep.subr.mxu0 0.0
    %1390 = vmatpush2.msra.mxu0 0.0
    %1391 = vmatprep.subr.mxu0 0.0
    %1392 = vmatpush2.msra.mxu0 0.0
    %1393 = vmatprep.subr.mxu0 0.0
    %1394 = vmatpush2.msra.mxu0 0.0
    %1395 = vmatprep.subr.mxu0 0.0
    %1396 = vmatpush2.msra.mxu0 0.0
    %1397 = vmatprep.subr.mxu0 0.0
    %1398 = vmatpush2.msra.mxu0 0.0
    %1399 = vmatprep.subr.mxu0 0.0
    %1400 = vmatpush2.msra.mxu0 0.0
    %1401 = vmatprep.subr.mxu0 0.0
    %1402 = vmatpush2.msra.mxu0 0.0
    %1403 = vmatprep.subr.mxu0 0.0
    %1404 = vmatpush2.msra.mxu0 0.0
    %1405 = vmatprep.subr.mxu0 0.0
    %1406 = vmatpush2.msra.mxu0 0.0
    %1407 = vmatprep.subr.mxu0 0.0
    %1408 = vmatpush2.msra.mxu0 0.0
    %1409 = vmatprep.mubr.f32.mxu0 0.0
    %1410 = vmatmul.mubr.f32.gmra.mxu0 %v1343
    %v1411 = vpop.f32.mrf.mxu0
    %v1412 = vadd.f32 0.0, %v1411
    %v1413 = vpop.f32.mrf.mxu0
    %1414 = vdwg.mxu0
    %v1416 = vrot.slane %v1412, 1
    %v1419 = vadd.f32 %v1338, %v1412
    %v1420 = vadd.f32 %v1339, %v1416
    %v1421 = vtanh.pop %v1419
    %v1422 = vtanh.pop %v1420
    %1423 = vst [vmem:[%s7 + $0x4] sm:$0x1] %v1421
    %1424 = vst [vmem:[%s7 + $0xc] sm:$0x1] %v1422
    %v1425 = vld [vmem:[%s7 + $0x5] sm:$0x1]
    %v1426 = vld [vmem:[%s7 + $0xd] sm:$0x1]
    %v1429 = vrot.slane %v1422, 7
    %v1430 = vsel %vm272, %v1429, %v1421
    %1432 = vmatprep.subr.mxu0 0.0
    %1433 = vmatpush1.msra.mxu0 %v994
    %1434 = vmatprep.subr.mxu0 0.0
    %1435 = vmatpush1.msra.mxu0 %v993
    %1436 = vmatprep.subr.mxu0 0.0
    %1437 = vmatpush1.msra.mxu0 %v992
    %1438 = vmatprep.subr.mxu0 0.0
    %1439 = vmatpush1.msra.mxu0 %v991
    %1440 = vmatprep.subr.mxu0 0.0
    %1441 = vmatpush1.msra.mxu0 %v990
    %1442 = vmatprep.subr.mxu0 0.0
    %1443 = vmatpush1.msra.mxu0 %v989
    %1444 = vmatprep.subr.mxu0 0.0
    %1445 = vmatpush1.msra.mxu0 %v988
    %1446 = vmatprep.subr.mxu0 0.0
    %1447 = vmatpush1.msra.mxu0 %v987
    %1448 = vmatprep.subr.mxu0 0.0
    %1449 = vmatpush1.msra.mxu0 %v986
    %1450 = vmatprep.subr.mxu0 0.0
    %1451 = vmatpush1.msra.mxu0 %v985
    %1452 = vmatprep.subr.mxu0 0.0
    %1453 = vmatpush1.msra.mxu0 %v984
    %1454 = vmatprep.subr.mxu0 0.0
    %1455 = vmatpush1.msra.mxu0 %v983
    %1456 = vmatprep.subr.mxu0 0.0
    %1457 = vmatpush1.msra.mxu0 %v982
    %1458 = vmatprep.subr.mxu0 0.0
    %1459 = vmatpush1.msra.mxu0 %v981
    %1460 = vmatprep.subr.mxu0 0.0
    %1461 = vmatpush1.msra.mxu0 %v980
    %1462 = vmatprep.subr.mxu0 0.0
    %1463 = vmatpush1.msra.mxu0 %v979
    %1464 = vmatprep.subr.mxu0 0.0
    %1465 = vmatpush2.msra.mxu0 0.0
    %1466 = vmatprep.subr.mxu0 0.0
    %1467 = vmatpush2.msra.mxu0 0.0
    %1468 = vmatprep.subr.mxu0 0.0
    %1469 = vmatpush2.msra.mxu0 0.0
    %1470 = vmatprep.subr.mxu0 0.0
    %1471 = vmatpush2.msra.mxu0 0.0
    %1472 = vmatprep.subr.mxu0 0.0
    %1473 = vmatpush2.msra.mxu0 0.0
    %1474 = vmatprep.subr.mxu0 0.0
    %1475 = vmatpush2.msra.mxu0 0.0
    %1476 = vmatprep.subr.mxu0 0.0
    %1477 = vmatpush2.msra.mxu0 0.0
    %1478 = vmatprep.subr.mxu0 0.0
    %1479 = vmatpush2.msra.mxu0 0.0
    %1480 = vmatprep.subr.mxu0 0.0
    %1481 = vmatpush2.msra.mxu0 0.0
    %1482 = vmatprep.subr.mxu0 0.0
    %1483 = vmatpush2.msra.mxu0 0.0
    %1484 = vmatprep.subr.mxu0 0.0
    %1485 = vmatpush2.msra.mxu0 0.0
    %1486 = vmatprep.subr.mxu0 0.0
    %1487 = vmatpush2.msra.mxu0 0.0
    %1488 = vmatprep.subr.mxu0 0.0
    %1489 = vmatpush2.msra.mxu0 0.0
    %1490 = vmatprep.subr.mxu0 0.0
    %1491 = vmatpush2.msra.mxu0 0.0
    %1492 = vmatprep.subr.mxu0 0.0
    %1493 = vmatpush2.msra.mxu0 0.0
    %1494 = vmatprep.subr.mxu0 0.0
    %1495 = vmatpush2.msra.mxu0 0.0
    %1496 = vmatprep.mubr.f32.mxu0 0.0
    %1497 = vmatmul.mubr.f32.gmra.mxu0 %v1430
    %v1498 = vpop.f32.mrf.mxu0
    %v1499 = vadd.f32 0.0, %v1498
    %v1500 = vpop.f32.mrf.mxu0
    %1501 = vdwg.mxu0
    %v1503 = vrot.slane %v1499, 1
    %v1506 = vadd.f32 %v1425, %v1499
    %v1507 = vadd.f32 %v1426, %v1503
    %v1508 = vtanh.pop %v1506
    %v1509 = vtanh.pop %v1507
    %1510 = vst [vmem:[%s7 + $0x5] sm:$0x1] %v1508
    %1511 = vst [vmem:[%s7 + $0xd] sm:$0x1] %v1509
    %v1512 = vld [vmem:[%s7 + $0x6] sm:$0x1]
    %v1513 = vld [vmem:[%s7 + $0xe] sm:$0x1]
    %v1516 = vrot.slane %v1509, 7
    %v1517 = vsel %vm272, %v1516, %v1508
    %1519 = vmatprep.subr.mxu0 0.0
    %1520 = vmatpush1.msra.mxu0 %v994
    %1521 = vmatprep.subr.mxu0 0.0
    %1522 = vmatpush1.msra.mxu0 %v993
    %1523 = vmatprep.subr.mxu0 0.0
    %1524 = vmatpush1.msra.mxu0 %v992
    %1525 = vmatprep.subr.mxu0 0.0
    %1526 = vmatpush1.msra.mxu0 %v991
    %1527 = vmatprep.subr.mxu0 0.0
    %1528 = vmatpush1.msra.mxu0 %v990
    %1529 = vmatprep.subr.mxu0 0.0
    %1530 = vmatpush1.msra.mxu0 %v989
    %1531 = vmatprep.subr.mxu0 0.0
    %1532 = vmatpush1.msra.mxu0 %v988
    %1533 = vmatprep.subr.mxu0 0.0
    %1534 = vmatpush1.msra.mxu0 %v987
    %1535 = vmatprep.subr.mxu0 0.0
    %1536 = vmatpush1.msra.mxu0 %v986
    %1537 = vmatprep.subr.mxu0 0.0
    %1538 = vmatpush1.msra.mxu0 %v985
    %1539 = vmatprep.subr.mxu0 0.0
    %1540 = vmatpush1.msra.mxu0 %v984
    %1541 = vmatprep.subr.mxu0 0.0
    %1542 = vmatpush1.msra.mxu0 %v983
    %1543 = vmatprep.subr.mxu0 0.0
    %1544 = vmatpush1.msra.mxu0 %v982
    %1545 = vmatprep.subr.mxu0 0.0
    %1546 = vmatpush1.msra.mxu0 %v981
    %1547 = vmatprep.subr.mxu0 0.0
    %1548 = vmatpush1.msra.mxu0 %v980
    %1549 = vmatprep.subr.mxu0 0.0
    %1550 = vmatpush1.msra.mxu0 %v979
    %1551 = vmatprep.subr.mxu0 0.0
    %1552 = vmatpush2.msra.mxu0 0.0
    %1553 = vmatprep.subr.mxu0 0.0
    %1554 = vmatpush2.msra.mxu0 0.0
    %1555 = vmatprep.subr.mxu0 0.0
    %1556 = vmatpush2.msra.mxu0 0.0
    %1557 = vmatprep.subr.mxu0 0.0
    %1558 = vmatpush2.msra.mxu0 0.0
    %1559 = vmatprep.subr.mxu0 0.0
    %1560 = vmatpush2.msra.mxu0 0.0
    %1561 = vmatprep.subr.mxu0 0.0
    %1562 = vmatpush2.msra.mxu0 0.0
    %1563 = vmatprep.subr.mxu0 0.0
    %1564 = vmatpush2.msra.mxu0 0.0
    %1565 = vmatprep.subr.mxu0 0.0
    %1566 = vmatpush2.msra.mxu0 0.0
    %1567 = vmatprep.subr.mxu0 0.0
    %1568 = vmatpush2.msra.mxu0 0.0
    %1569 = vmatprep.subr.mxu0 0.0
    %1570 = vmatpush2.msra.mxu0 0.0
    %1571 = vmatprep.subr.mxu0 0.0
    %1572 = vmatpush2.msra.mxu0 0.0
    %1573 = vmatprep.subr.mxu0 0.0
    %1574 = vmatpush2.msra.mxu0 0.0
    %1575 = vmatprep.subr.mxu0 0.0
    %1576 = vmatpush2.msra.mxu0 0.0
    %1577 = vmatprep.subr.mxu0 0.0
    %1578 = vmatpush2.msra.mxu0 0.0
    %1579 = vmatprep.subr.mxu0 0.0
    %1580 = vmatpush2.msra.mxu0 0.0
    %1581 = vmatprep.subr.mxu0 0.0
    %1582 = vmatpush2.msra.mxu0 0.0
    %1583 = vmatprep.mubr.f32.mxu0 0.0
    %1584 = vmatmul.mubr.f32.gmra.mxu0 %v1517
    %v1585 = vpop.f32.mrf.mxu0
    %v1586 = vadd.f32 0.0, %v1585
    %v1587 = vpop.f32.mrf.mxu0
    %1588 = vdwg.mxu0
    %v1590 = vrot.slane %v1586, 1
    %v1593 = vadd.f32 %v1512, %v1586
    %v1594 = vadd.f32 %v1513, %v1590
    %v1595 = vtanh.pop %v1593
    %v1596 = vtanh.pop %v1594
    %1597 = vst [vmem:[%s7 + $0x6] sm:$0x1] %v1595
    %1598 = vst [vmem:[%s7 + $0xe] sm:$0x1] %v1596
    %v1599 = vld [vmem:[%s7 + $0x7] sm:$0x1]
    %v1600 = vld [vmem:[%s7 + $0xf] sm:$0x1]
    %v1603 = vrot.slane %v1596, 7
    %v1604 = vsel %vm272, %v1603, %v1595
    %1606 = vmatprep.subr.mxu0 0.0
    %1607 = vmatpush1.msra.mxu0 %v994
    %1608 = vmatprep.subr.mxu0 0.0
    %1609 = vmatpush1.msra.mxu0 %v993
    %1610 = vmatprep.subr.mxu0 0.0
    %1611 = vmatpush1.msra.mxu0 %v992
    %1612 = vmatprep.subr.mxu0 0.0
    %1613 = vmatpush1.msra.mxu0 %v991
    %1614 = vmatprep.subr.mxu0 0.0
    %1615 = vmatpush1.msra.mxu0 %v990
    %1616 = vmatprep.subr.mxu0 0.0
    %1617 = vmatpush1.msra.mxu0 %v989
    %1618 = vmatprep.subr.mxu0 0.0
    %1619 = vmatpush1.msra.mxu0 %v988
    %1620 = vmatprep.subr.mxu0 0.0
    %1621 = vmatpush1.msra.mxu0 %v987
    %1622 = vmatprep.subr.mxu0 0.0
    %1623 = vmatpush1.msra.mxu0 %v986
    %1624 = vmatprep.subr.mxu0 0.0
    %1625 = vmatpush1.msra.mxu0 %v985
    %1626 = vmatprep.subr.mxu0 0.0
    %1627 = vmatpush1.msra.mxu0 %v984
    %1628 = vmatprep.subr.mxu0 0.0
    %1629 = vmatpush1.msra.mxu0 %v983
    %1630 = vmatprep.subr.mxu0 0.0
    %1631 = vmatpush1.msra.mxu0 %v982
    %1632 = vmatprep.subr.mxu0 0.0
    %1633 = vmatpush1.msra.mxu0 %v981
    %1634 = vmatprep.subr.mxu0 0.0
    %1635 = vmatpush1.msra.mxu0 %v980
    %1636 = vmatprep.subr.mxu0 0.0
    %1637 = vmatpush1.msra.mxu0 %v979
    %1638 = vmatprep.subr.mxu0 0.0
    %1639 = vmatpush2.msra.mxu0 0.0
    %1640 = vmatprep.subr.mxu0 0.0
    %1641 = vmatpush2.msra.mxu0 0.0
    %1642 = vmatprep.subr.mxu0 0.0
    %1643 = vmatpush2.msra.mxu0 0.0
    %1644 = vmatprep.subr.mxu0 0.0
    %1645 = vmatpush2.msra.mxu0 0.0
    %1646 = vmatprep.subr.mxu0 0.0
    %1647 = vmatpush2.msra.mxu0 0.0
    %1648 = vmatprep.subr.mxu0 0.0
    %1649 = vmatpush2.msra.mxu0 0.0
    %1650 = vmatprep.subr.mxu0 0.0
    %1651 = vmatpush2.msra.mxu0 0.0
    %1652 = vmatprep.subr.mxu0 0.0
    %1653 = vmatpush2.msra.mxu0 0.0
    %1654 = vmatprep.subr.mxu0 0.0
    %1655 = vmatpush2.msra.mxu0 0.0
    %1656 = vmatprep.subr.mxu0 0.0
    %1657 = vmatpush2.msra.mxu0 0.0
    %1658 = vmatprep.subr.mxu0 0.0
    %1659 = vmatpush2.msra.mxu0 0.0
    %1660 = vmatprep.subr.mxu0 0.0
    %1661 = vmatpush2.msra.mxu0 0.0
    %1662 = vmatprep.subr.mxu0 0.0
    %1663 = vmatpush2.msra.mxu0 0.0
    %1664 = vmatprep.subr.mxu0 0.0
    %1665 = vmatpush2.msra.mxu0 0.0
    %1666 = vmatprep.subr.mxu0 0.0
    %1667 = vmatpush2.msra.mxu0 0.0
    %1668 = vmatprep.subr.mxu0 0.0
    %1669 = vmatpush2.msra.mxu0 0.0
    %1670 = vmatprep.mubr.f32.mxu0 0.0
    %1671 = vmatmul.mubr.f32.gmra.mxu0 %v1604
    %v1672 = vpop.f32.mrf.mxu0
    %v1673 = vadd.f32 0.0, %v1672
    %v1674 = vpop.f32.mrf.mxu0
    %1675 = vdwg.mxu0
    %v1677 = vrot.slane %v1673, 1
    %v1680 = vadd.f32 %v1599, %v1673
    %v1681 = vadd.f32 %v1600, %v1677
    %v1682 = vtanh.pop %v1680
    %v1683 = vtanh.pop %v1681
    %1684 = vst [vmem:[%s7 + $0x7] sm:$0x1] %v1682
    %1685 = vst [vmem:[%s7 + $0xf] sm:$0x1] %v1683
    // Predicated region
    $region42: #{forward.2} parent=1 // pred_check
      _
    $region43: #{forward.2} parent=1 // pred_check_branch
      %1687 = sbr.rel (0) target = $region45
    $region44: #{forward.2} parent=1 // pred_region
      _
    $region45: #{forward.2} parent=1 // pred_fallthru
      _
    // Predicated region
    $region46: #{forward.2} parent=1 // pred_check
      _
    $region47: #{forward.2} parent=1 // pred_check_branch
      %1689 = sbr.rel (0) target = $region49
    $region48: #{forward.2} parent=1 // pred_region
      _
    $region49: #{forward.2} parent=1 // pred_fallthru
      _
    %1690 = vsyncpa [#allocation4], 1
    %1691 = vsyncpa [#allocation6], 1

</llo_original>
